<compile_context>
chip_gen: v6e
topology: v6e:2x2x1
jax: 0.10.0
libtpu: 0.0.40
codegen_flags: <defaults>
</compile_context>

<pallas_src>
import numpy as np
import jax
import jax.numpy as jnp
from jax.experimental import pallas as pl
from jax.experimental.pallas import tpu as pltpu

EPS = 1e-5  # nn.BatchNorm2d default eps


def _subpixel_taps(kernel_size, stride):
    """Sub-pixel (pixel-shuffle) decomposition of a stride-s ConvTranspose2d.

    Returns (taps, (pad_lo, pad_hi), n_off) where taps[d] is the list of
    (slice_offset, kernel_index) pairs used by output phase d (per spatial dim,
    ordered by increasing input offset), pad_* is the edge padding of the input,
    and n_off is the number of distinct slice offsets.
    """
    k, s = kernel_size, stride
    p = (k - s) // 2
    raw = []
    for d in range(s):
        khs = [kh for kh in range(k) if (kh - d - p) % s == 0]
        raw.append(sorted(((d + p - kh) // s, kh) for kh in khs))
    us = [u for lst in raw for (u, _) in lst]
    pad_lo = max(0, -min(us))
    pad_hi = max(0, max(us))
    taps = [[(u + pad_lo, kh) for (u, kh) in lst] for lst in raw]
    n_off = max(a for lst in taps for (a, _) in lst) + 1
    return taps, (pad_lo, pad_hi), n_off


def upsample2d_forward(x_nchw, w_pt, b_pt, gamma, beta, kernel_size, ratio):
    """Upsample2D forward: ConvTranspose2d -> BatchNorm2d (training mode) -> ReLU.

    x_nchw: (N, Cin, H, W) f32
    w_pt:   (Cin, Cout, k, k) f32   (PyTorch ConvTranspose2d weight layout)
    b_pt:   (Cout,) f32             (ConvTranspose2d bias -- cancelled by BN)
    gamma, beta: (Cout,) f32        (BatchNorm2d affine parameters)
    returns (N, Cout, H*ratio, W*ratio) f32 (NCHW, matching the PyTorch module)
    """
    del b_pt  # a per-channel constant shift is exactly absorbed by training-mode BN
    k, s = kernel_size, ratio
    if k % s != 0 or (k - s) % 2 != 0:
        raise NotImplementedError("sub-pixel decomposition assumes s | k and even k - s")

    N, Cin, H, W = x_nchw.shape
    Cout = w_pt.shape[1]
    Ho, Wo = H * s, W * s
    Mp = N * H * W                        # output pixels per phase
    M = s * s * Mp                        # total output pixels = N*Ho*Wo
    assert Mp % 128 == 0, "per-phase pixel count must be a multiple of 128 (lane axis)"
    # TODO(synk): pad/mask Mp up to a multiple of 128 for arbitrary shapes.

    taps, (pad_lo, pad_hi), n_off = _subpixel_taps(k, s)
    phase_list = [(dy, dx) for dy in range(s) for dx in range(s)]
    T = len(taps[0])                      # taps per spatial dim (= k // s)

    # ---------------- glue: compact channel-first shifted views (pure data movement)
    x_cf = jnp.transpose(x_nchw, (1, 0, 2, 3)).astype(jnp.float32)       # (Cin, N, H, W)
    x_pad = jnp.pad(x_cf, ((0, 0), (0, 0), (pad_lo, pad_hi), (pad_lo, pad_hi)))
    xs = jnp.stack(
        [jnp.stack([x_pad[:, :, a:a + H, b:b + W].reshape(Cin, Mp)
                    for b in range(n_off)], axis=0)
         for a in range(n_off)], axis=0).astype(jnp.bfloat16)            # (n_off, n_off, Cin, Mp)

    # per-(phase, tap) weights, transposed to (Cout, Cin) for the lane-dense matmul
    w_rows = []
    for dy, dx in phase_list:
        per_tap = [jnp.transpose(w_pt[:, :, kh, kw])                     # (Cout, Cin)
                   for (_, kh) in taps[dy] for (_, kw) in taps[dx]]
        w_rows.append(jnp.stack(per_tap, axis=0))                        # (T*T, Cout, Cin)
    w_phase = jnp.stack(w_rows, axis=0).astype(jnp.bfloat16)             # (s*s, T*T, Cout, Cin)

    params = jnp.stack([gamma, beta], axis=0).astype(jnp.float32).reshape(2, Cout, 1)

    inv_m = 1.0 / float(M)

    # ------------- Pallas kernel: sub-pixel matmuls + 1-pass BN + fused scale/shift + ReLU
    # NOTE: BN stats over the whole (Cout, M) block are valid only because grid=(1,).
    def kernel(xs_ref, w_ref, p_ref, out_ref):
        ys = []
        for pidx, (dy, dx) in enumerate(phase_list):
            acc = None
            tap_pairs = [(ta, tb) for ta in taps[dy] for tb in taps[dx]]
            for t, ((a, _), (b, _)) in enumerate(tap_pairs):
                part = jnp.dot(w_ref[pidx, t], xs_ref[a, b],
                               preferred_element_type=jnp.float32)        # (Cout, Mp) f32
                acc = part if acc is None else acc + part
            ys.append(acc)
        y = jnp.concatenate(ys, axis=1)                                   # (Cout, M) f32, lane dense

        # training-mode BatchNorm2d statistics over all N*Ho*Wo pixels, single pass
        sum_y = jnp.sum(y, axis=1, keepdims=True)                         # (Cout, 1)
        sum_y2 = jnp.sum(y * y, axis=1, keepdims=True)                    # (Cout, 1)
        mean = sum_y * inv_m
        var = sum_y2 * inv_m - mean * mean                                # biased variance
        scale = p_ref[0] * jax.lax.rsqrt(var + EPS)                       # gamma / sqrt(var + eps)
        shift = p_ref[1] - mean * scale                                   # beta  - mean * scale
        out_ref[...] = jnp.maximum(y * scale + shift, 0.0)                # fused affine + ReLU

    out2d = pl.pallas_call(
        kernel,
        out_shape=jax.ShapeDtypeStruct((Cout, M), jnp.float32),
        grid=(1,),
        in_specs=[
            pl.BlockSpec((n_off, n_off, Cin, Mp), lambda i: (0, 0, 0, 0)),
            pl.BlockSpec((s * s, T * T, Cout, Cin), lambda i: (0, 0, 0, 0)),
            pl.BlockSpec((2, Cout, 1), lambda i: (0, 0, 0)),
        ],
        out_specs=pl.BlockSpec((Cout, M), lambda i: (0, 0)),
        compiler_params=pltpu.CompilerParams(dimension_semantics=("arbitrary",)),
    )(xs, w_phase, params)
    # TODO(synk): for production sizes tile M across the grid ("parallel" for v7x
    # megacore / VMEM limits) and switch BatchNorm to a two-pass / partial-sum scheme.

    # ---------------- glue: un-shuffle the s*s phases back to NCHW (tiny transpose)
    out = out2d.reshape(Cout, s, s, N, H, W)
    out = jnp.transpose(out, (3, 0, 4, 1, 5, 2)).reshape(N, Cout, Ho, Wo)
    return out


def reference_forward(x_nchw, w_pt, b_pt, gamma, beta, kernel_size, ratio):
    """Pure-JAX/XLA reference: ConvTranspose2d (+bias) -> BatchNorm2d(train) -> ReLU."""
    k, s = kernel_size, ratio
    p = (k - s) // 2
    edge = k - 1 - p
    # transposed conv == zero-dilated regular conv with the flipped, channel-swapped kernel
    w_eff = jnp.transpose(w_pt, (1, 0, 2, 3))[:, :, ::-1, ::-1]           # (Cout, Cin, k, k)
    y = jax.lax.conv_general_dilated(
        x_nchw.astype(jnp.bfloat16), w_eff.astype(jnp.bfloat16),
        window_strides=(1, 1), padding=[(edge, edge), (edge, edge)],
        lhs_dilation=(s, s), dimension_numbers=("NCHW", "OIHW", "NCHW"),
        preferred_element_type=jnp.float32)
    y = y + b_pt.reshape(1, -1, 1, 1)          # bias kept here; training-mode BN cancels it
    mean = jnp.mean(y, axis=(0, 2, 3), keepdims=True)
    var = jnp.mean(jnp.square(y - mean), axis=(0, 2, 3), keepdims=True)
    y = (y - mean) * jax.lax.rsqrt(var + EPS)
    y = y * gamma.reshape(1, -1, 1, 1) + beta.reshape(1, -1, 1, 1)
    return jnp.maximum(y, 0.0)


if __name__ == "__main__":
    in_channels, out_channels, kernel_size, ratio = 4, 8, 4, 2
    N, H, W = 2, 16, 16

    key = jax.random.PRNGKey(0)
    kx, kw, kb, kg, kbe = jax.random.split(key, 5)

    x = jax.random.normal(kx, (N, in_channels, H, W), dtype=jnp.float32)
    # PyTorch ConvTranspose2d weight layout: (in_channels, out_channels, k, k)
    w_pt = 0.1 * jax.random.normal(
        kw, (in_channels, out_channels, kernel_size, kernel_size), dtype=jnp.float32)
    b_pt = 0.1 * jax.random.normal(kb, (out_channels,), dtype=jnp.float32)
    gamma = 1.0 + 0.1 * jax.random.normal(kg, (out_channels,), dtype=jnp.float32)
    beta = 0.1 * jax.random.normal(kbe, (out_channels,), dtype=jnp.float32)
    # TODO(synk): nn.BatchNorm2d running-stat updates (a training-mode side effect on
    # module buffers) are not reproduced; only the forward activations are.

    fwd = jax.jit(upsample2d_forward, static_argnames=("kernel_size", "ratio"))
    out = jax.block_until_ready(
        fwd(x, w_pt, b_pt, gamma, beta, kernel_size=kernel_size, ratio=ratio))
    assert out.shape == (N, out_channels, H * ratio, W * ratio), out.shape

    ref = reference_forward(x, w_pt, b_pt, gamma, beta, kernel_size, ratio)
    np.testing.assert_allclose(np.asarray(out), np.asarray(ref), atol=1e-3, rtol=1e-3)

    print("KERNEL_OK")
</pallas_src>

<mosaic_0001>
module attributes {stable_mosaic.version = 11 : i64} {
  func.func @kernel(%arg0: i32, %arg1: memref<3x3x4x512xbf16, #tpu.memory_space<vmem>>, %arg2: memref<4x4x8x4xbf16, #tpu.memory_space<vmem>>, %arg3: memref<2x8x1xf32, #tpu.memory_space<vmem>>, %arg4: memref<8x2048xf32, #tpu.memory_space<vmem>>) attributes {dimension_semantics = [#tpu.dimension_semantics<arbitrary>], iteration_bounds = array<i64: 1>, scalar_prefetch = 0 : i64, scratch_operands = 0 : i64, tpu.core_type = #tpu.core_type<tc>, window_params = [{pipeline_mode = #tpu.pipeline_mode<synchronous>, transform_indices = @transform_0, window_bounds = array<i64: 3, 3, 4, 512>}, {pipeline_mode = #tpu.pipeline_mode<synchronous>, transform_indices = @transform_1, window_bounds = array<i64: 4, 4, 8, 4>}, {pipeline_mode = #tpu.pipeline_mode<synchronous>, transform_indices = @transform_2, window_bounds = array<i64: 2, 8, 1>}, {pipeline_mode = #tpu.pipeline_mode<synchronous>, transform_indices = @transform_3, window_bounds = array<i64: 8, 2048>}]} {
    %c0 = arith.constant 0 : index
    %c0_0 = arith.constant 0 : index
    %c0_1 = arith.constant 0 : index
    %c0_2 = arith.constant 0 : index
    %0 = vector.load %arg2[%c0, %c0_0, %c0_1, %c0_2] : memref<4x4x8x4xbf16, #tpu.memory_space<vmem>>, vector<1x1x8x4xbf16>
    %1 = vector.shape_cast %0 : vector<1x1x8x4xbf16> to vector<8x4xbf16>
    %c0_3 = arith.constant 0 : index
    %c0_4 = arith.constant 0 : index
    %c0_5 = arith.constant 0 : index
    %c0_6 = arith.constant 0 : index
    %2 = vector.load %arg1[%c0_3, %c0_4, %c0_5, %c0_6] : memref<3x3x4x512xbf16, #tpu.memory_space<vmem>>, vector<1x1x4x512xbf16>
    %3 = vector.shape_cast %2 : vector<1x1x4x512xbf16> to vector<4x512xbf16>
    %cst = arith.constant dense<0.000000e+00> : vector<8x512xf32>
    %4 = tpu.matmul %1, %3, %cst {dimension_numbers = #tpu.dot_dimension_numbers<[1], [0], [0], [1], [0, 0, 1, 1], [], []>} : vector<8x4xbf16>, vector<4x512xbf16>, vector<8x512xf32> -> vector<8x512xf32>
    %c0_7 = arith.constant 0 : index
    %c1 = arith.constant 1 : index
    %c0_8 = arith.constant 0 : index
    %c0_9 = arith.constant 0 : index
    %5 = vector.load %arg2[%c0_7, %c1, %c0_8, %c0_9] : memref<4x4x8x4xbf16, #tpu.memory_space<vmem>>, vector<1x1x8x4xbf16>
    %6 = vector.shape_cast %5 : vector<1x1x8x4xbf16> to vector<8x4xbf16>
    %c0_10 = arith.constant 0 : index
    %c1_11 = arith.constant 1 : index
    %c0_12 = arith.constant 0 : index
    %c0_13 = arith.constant 0 : index
    %7 = vector.load %arg1[%c0_10, %c1_11, %c0_12, %c0_13] : memref<3x3x4x512xbf16, #tpu.memory_space<vmem>>, vector<1x1x4x512xbf16>
    %8 = vector.shape_cast %7 : vector<1x1x4x512xbf16> to vector<4x512xbf16>
    %cst_14 = arith.constant dense<0.000000e+00> : vector<8x512xf32>
    %9 = tpu.matmul %6, %8, %cst_14 {dimension_numbers = #tpu.dot_dimension_numbers<[1], [0], [0], [1], [0, 0, 1, 1], [], []>} : vector<8x4xbf16>, vector<4x512xbf16>, vector<8x512xf32> -> vector<8x512xf32>
    %10 = arith.addf %4, %9 : vector<8x512xf32>
    %c0_15 = arith.constant 0 : index
    %c2 = arith.constant 2 : index
    %c0_16 = arith.constant 0 : index
    %c0_17 = arith.constant 0 : index
    %11 = vector.load %arg2[%c0_15, %c2, %c0_16, %c0_17] : memref<4x4x8x4xbf16, #tpu.memory_space<vmem>>, vector<1x1x8x4xbf16>
    %12 = vector.shape_cast %11 : vector<1x1x8x4xbf16> to vector<8x4xbf16>
    %c1_18 = arith.constant 1 : index
    %c0_19 = arith.constant 0 : index
    %c0_20 = arith.constant 0 : index
    %c0_21 = arith.constant 0 : index
    %13 = vector.load %arg1[%c1_18, %c0_19, %c0_20, %c0_21] : memref<3x3x4x512xbf16, #tpu.memory_space<vmem>>, vector<1x1x4x512xbf16>
    %14 = vector.shape_cast %13 : vector<1x1x4x512xbf16> to vector<4x512xbf16>
    %cst_22 = arith.constant dense<0.000000e+00> : vector<8x512xf32>
    %15 = tpu.matmul %12, %14, %cst_22 {dimension_numbers = #tpu.dot_dimension_numbers<[1], [0], [0], [1], [0, 0, 1, 1], [], []>} : vector<8x4xbf16>, vector<4x512xbf16>, vector<8x512xf32> -> vector<8x512xf32>
    %16 = arith.addf %10, %15 : vector<8x512xf32>
    %c0_23 = arith.constant 0 : index
    %c3 = arith.constant 3 : index
    %c0_24 = arith.constant 0 : index
    %c0_25 = arith.constant 0 : index
    %17 = vector.load %arg2[%c0_23, %c3, %c0_24, %c0_25] : memref<4x4x8x4xbf16, #tpu.memory_space<vmem>>, vector<1x1x8x4xbf16>
    %18 = vector.shape_cast %17 : vector<1x1x8x4xbf16> to vector<8x4xbf16>
    %c1_26 = arith.constant 1 : index
    %c1_27 = arith.constant 1 : index
    %c0_28 = arith.constant 0 : index
    %c0_29 = arith.constant 0 : index
    %19 = vector.load %arg1[%c1_26, %c1_27, %c0_28, %c0_29] : memref<3x3x4x512xbf16, #tpu.memory_space<vmem>>, vector<1x1x4x512xbf16>
    %20 = vector.shape_cast %19 : vector<1x1x4x512xbf16> to vector<4x512xbf16>
    %cst_30 = arith.constant dense<0.000000e+00> : vector<8x512xf32>
    %21 = tpu.matmul %18, %20, %cst_30 {dimension_numbers = #tpu.dot_dimension_numbers<[1], [0], [0], [1], [0, 0, 1, 1], [], []>} : vector<8x4xbf16>, vector<4x512xbf16>, vector<8x512xf32> -> vector<8x512xf32>
    %22 = arith.addf %16, %21 : vector<8x512xf32>
    %c1_31 = arith.constant 1 : index
    %c0_32 = arith.constant 0 : index
    %c0_33 = arith.constant 0 : index
    %c0_34 = arith.constant 0 : index
    %23 = vector.load %arg2[%c1_31, %c0_32, %c0_33, %c0_34] : memref<4x4x8x4xbf16, #tpu.memory_space<vmem>>, vector<1x1x8x4xbf16>
    %24 = vector.shape_cast %23 : vector<1x1x8x4xbf16> to vector<8x4xbf16>
    %c0_35 = arith.constant 0 : index
    %c1_36 = arith.constant 1 : index
    %c0_37 = arith.constant 0 : index
    %c0_38 = arith.constant 0 : index
    %25 = vector.load %arg1[%c0_35, %c1_36, %c0_37, %c0_38] : memref<3x3x4x512xbf16, #tpu.memory_space<vmem>>, vector<1x1x4x512xbf16>
    %26 = vector.shape_cast %25 : vector<1x1x4x512xbf16> to vector<4x512xbf16>
    %cst_39 = arith.constant dense<0.000000e+00> : vector<8x512xf32>
    %27 = tpu.matmul %24, %26, %cst_39 {dimension_numbers = #tpu.dot_dimension_numbers<[1], [0], [0], [1], [0, 0, 1, 1], [], []>} : vector<8x4xbf16>, vector<4x512xbf16>, vector<8x512xf32> -> vector<8x512xf32>
    %c1_40 = arith.constant 1 : index
    %c1_41 = arith.constant 1 : index
    %c0_42 = arith.constant 0 : index
    %c0_43 = arith.constant 0 : index
    %28 = vector.load %arg2[%c1_40, %c1_41, %c0_42, %c0_43] : memref<4x4x8x4xbf16, #tpu.memory_space<vmem>>, vector<1x1x8x4xbf16>
    %29 = vector.shape_cast %28 : vector<1x1x8x4xbf16> to vector<8x4xbf16>
    %c0_44 = arith.constant 0 : index
    %c2_45 = arith.constant 2 : index
    %c0_46 = arith.constant 0 : index
    %c0_47 = arith.constant 0 : index
    %30 = vector.load %arg1[%c0_44, %c2_45, %c0_46, %c0_47] : memref<3x3x4x512xbf16, #tpu.memory_space<vmem>>, vector<1x1x4x512xbf16>
    %31 = vector.shape_cast %30 : vector<1x1x4x512xbf16> to vector<4x512xbf16>
    %cst_48 = arith.constant dense<0.000000e+00> : vector<8x512xf32>
    %32 = tpu.matmul %29, %31, %cst_48 {dimension_numbers = #tpu.dot_dimension_numbers<[1], [0], [0], [1], [0, 0, 1, 1], [], []>} : vector<8x4xbf16>, vector<4x512xbf16>, vector<8x512xf32> -> vector<8x512xf32>
    %33 = arith.addf %27, %32 : vector<8x512xf32>
    %c1_49 = arith.constant 1 : index
    %c2_50 = arith.constant 2 : index
    %c0_51 = arith.constant 0 : index
    %c0_52 = arith.constant 0 : index
    %34 = vector.load %arg2[%c1_49, %c2_50, %c0_51, %c0_52] : memref<4x4x8x4xbf16, #tpu.memory_space<vmem>>, vector<1x1x8x4xbf16>
    %35 = vector.shape_cast %34 : vector<1x1x8x4xbf16> to vector<8x4xbf16>
    %c1_53 = arith.constant 1 : index
    %c1_54 = arith.constant 1 : index
    %c0_55 = arith.constant 0 : index
    %c0_56 = arith.constant 0 : index
    %36 = vector.load %arg1[%c1_53, %c1_54, %c0_55, %c0_56] : memref<3x3x4x512xbf16, #tpu.memory_space<vmem>>, vector<1x1x4x512xbf16>
    %37 = vector.shape_cast %36 : vector<1x1x4x512xbf16> to vector<4x512xbf16>
    %cst_57 = arith.constant dense<0.000000e+00> : vector<8x512xf32>
    %38 = tpu.matmul %35, %37, %cst_57 {dimension_numbers = #tpu.dot_dimension_numbers<[1], [0], [0], [1], [0, 0, 1, 1], [], []>} : vector<8x4xbf16>, vector<4x512xbf16>, vector<8x512xf32> -> vector<8x512xf32>
    %39 = arith.addf %33, %38 : vector<8x512xf32>
    %c1_58 = arith.constant 1 : index
    %c3_59 = arith.constant 3 : index
    %c0_60 = arith.constant 0 : index
    %c0_61 = arith.constant 0 : index
    %40 = vector.load %arg2[%c1_58, %c3_59, %c0_60, %c0_61] : memref<4x4x8x4xbf16, #tpu.memory_space<vmem>>, vector<1x1x8x4xbf16>
    %41 = vector.shape_cast %40 : vector<1x1x8x4xbf16> to vector<8x4xbf16>
    %c1_62 = arith.constant 1 : index
    %c2_63 = arith.constant 2 : index
    %c0_64 = arith.constant 0 : index
    %c0_65 = arith.constant 0 : index
    %42 = vector.load %arg1[%c1_62, %c2_63, %c0_64, %c0_65] : memref<3x3x4x512xbf16, #tpu.memory_space<vmem>>, vector<1x1x4x512xbf16>
    %43 = vector.shape_cast %42 : vector<1x1x4x512xbf16> to vector<4x512xbf16>
    %cst_66 = arith.constant dense<0.000000e+00> : vector<8x512xf32>
    %44 = tpu.matmul %41, %43, %cst_66 {dimension_numbers = #tpu.dot_dimension_numbers<[1], [0], [0], [1], [0, 0, 1, 1], [], []>} : vector<8x4xbf16>, vector<4x512xbf16>, vector<8x512xf32> -> vector<8x512xf32>
    %45 = arith.addf %39, %44 : vector<8x512xf32>
    %c2_67 = arith.constant 2 : index
    %c0_68 = arith.constant 0 : index
    %c0_69 = arith.constant 0 : index
    %c0_70 = arith.constant 0 : index
    %46 = vector.load %arg2[%c2_67, %c0_68, %c0_69, %c0_70] : memref<4x4x8x4xbf16, #tpu.memory_space<vmem>>, vector<1x1x8x4xbf16>
    %47 = vector.shape_cast %46 : vector<1x1x8x4xbf16> to vector<8x4xbf16>
    %c1_71 = arith.constant 1 : index
    %c0_72 = arith.constant 0 : index
    %c0_73 = arith.constant 0 : index
    %c0_74 = arith.constant 0 : index
    %48 = vector.load %arg1[%c1_71, %c0_72, %c0_73, %c0_74] : memref<3x3x4x512xbf16, #tpu.memory_space<vmem>>, vector<1x1x4x512xbf16>
    %49 = vector.shape_cast %48 : vector<1x1x4x512xbf16> to vector<4x512xbf16>
    %cst_75 = arith.constant dense<0.000000e+00> : vector<8x512xf32>
    %50 = tpu.matmul %47, %49, %cst_75 {dimension_numbers = #tpu.dot_dimension_numbers<[1], [0], [0], [1], [0, 0, 1, 1], [], []>} : vector<8x4xbf16>, vector<4x512xbf16>, vector<8x512xf32> -> vector<8x512xf32>
    %c2_76 = arith.constant 2 : index
    %c1_77 = arith.constant 1 : index
    %c0_78 = arith.constant 0 : index
    %c0_79 = arith.constant 0 : index
    %51 = vector.load %arg2[%c2_76, %c1_77, %c0_78, %c0_79] : memref<4x4x8x4xbf16, #tpu.memory_space<vmem>>, vector<1x1x8x4xbf16>
    %52 = vector.shape_cast %51 : vector<1x1x8x4xbf16> to vector<8x4xbf16>
    %c1_80 = arith.constant 1 : index
    %c1_81 = arith.constant 1 : index
    %c0_82 = arith.constant 0 : index
    %c0_83 = arith.constant 0 : index
    %53 = vector.load %arg1[%c1_80, %c1_81, %c0_82, %c0_83] : memref<3x3x4x512xbf16, #tpu.memory_space<vmem>>, vector<1x1x4x512xbf16>
    %54 = vector.shape_cast %53 : vector<1x1x4x512xbf16> to vector<4x512xbf16>
    %cst_84 = arith.constant dense<0.000000e+00> : vector<8x512xf32>
    %55 = tpu.matmul %52, %54, %cst_84 {dimension_numbers = #tpu.dot_dimension_numbers<[1], [0], [0], [1], [0, 0, 1, 1], [], []>} : vector<8x4xbf16>, vector<4x512xbf16>, vector<8x512xf32> -> vector<8x512xf32>
    %56 = arith.addf %50, %55 : vector<8x512xf32>
    %c2_85 = arith.constant 2 : index
    %c2_86 = arith.constant 2 : index
    %c0_87 = arith.constant 0 : index
    %c0_88 = arith.constant 0 : index
    %57 = vector.load %arg2[%c2_85, %c2_86, %c0_87, %c0_88] : memref<4x4x8x4xbf16, #tpu.memory_space<vmem>>, vector<1x1x8x4xbf16>
    %58 = vector.shape_cast %57 : vector<1x1x8x4xbf16> to vector<8x4xbf16>
    %c2_89 = arith.constant 2 : index
    %c0_90 = arith.constant 0 : index
    %c0_91 = arith.constant 0 : index
    %c0_92 = arith.constant 0 : index
    %59 = vector.load %arg1[%c2_89, %c0_90, %c0_91, %c0_92] : memref<3x3x4x512xbf16, #tpu.memory_space<vmem>>, vector<1x1x4x512xbf16>
    %60 = vector.shape_cast %59 : vector<1x1x4x512xbf16> to vector<4x512xbf16>
    %cst_93 = arith.constant dense<0.000000e+00> : vector<8x512xf32>
    %61 = tpu.matmul %58, %60, %cst_93 {dimension_numbers = #tpu.dot_dimension_numbers<[1], [0], [0], [1], [0, 0, 1, 1], [], []>} : vector<8x4xbf16>, vector<4x512xbf16>, vector<8x512xf32> -> vector<8x512xf32>
    %62 = arith.addf %56, %61 : vector<8x512xf32>
    %c2_94 = arith.constant 2 : index
    %c3_95 = arith.constant 3 : index
    %c0_96 = arith.constant 0 : index
    %c0_97 = arith.constant 0 : index
    %63 = vector.load %arg2[%c2_94, %c3_95, %c0_96, %c0_97] : memref<4x4x8x4xbf16, #tpu.memory_space<vmem>>, vector<1x1x8x4xbf16>
    %64 = vector.shape_cast %63 : vector<1x1x8x4xbf16> to vector<8x4xbf16>
    %c2_98 = arith.constant 2 : index
    %c1_99 = arith.constant 1 : index
    %c0_100 = arith.constant 0 : index
    %c0_101 = arith.constant 0 : index
    %65 = vector.load %arg1[%c2_98, %c1_99, %c0_100, %c0_101] : memref<3x3x4x512xbf16, #tpu.memory_space<vmem>>, vector<1x1x4x512xbf16>
    %66 = vector.shape_cast %65 : vector<1x1x4x512xbf16> to vector<4x512xbf16>
    %cst_102 = arith.constant dense<0.000000e+00> : vector<8x512xf32>
    %67 = tpu.matmul %64, %66, %cst_102 {dimension_numbers = #tpu.dot_dimension_numbers<[1], [0], [0], [1], [0, 0, 1, 1], [], []>} : vector<8x4xbf16>, vector<4x512xbf16>, vector<8x512xf32> -> vector<8x512xf32>
    %68 = arith.addf %62, %67 : vector<8x512xf32>
    %c3_103 = arith.constant 3 : index
    %c0_104 = arith.constant 0 : index
    %c0_105 = arith.constant 0 : index
    %c0_106 = arith.constant 0 : index
    %69 = vector.load %arg2[%c3_103, %c0_104, %c0_105, %c0_106] : memref<4x4x8x4xbf16, #tpu.memory_space<vmem>>, vector<1x1x8x4xbf16>
    %70 = vector.shape_cast %69 : vector<1x1x8x4xbf16> to vector<8x4xbf16>
    %c1_107 = arith.constant 1 : index
    %c1_108 = arith.constant 1 : index
    %c0_109 = arith.constant 0 : index
    %c0_110 = arith.constant 0 : index
    %71 = vector.load %arg1[%c1_107, %c1_108, %c0_109, %c0_110] : memref<3x3x4x512xbf16, #tpu.memory_space<vmem>>, vector<1x1x4x512xbf16>
    %72 = vector.shape_cast %71 : vector<1x1x4x512xbf16> to vector<4x512xbf16>
    %cst_111 = arith.constant dense<0.000000e+00> : vector<8x512xf32>
    %73 = tpu.matmul %70, %72, %cst_111 {dimension_numbers = #tpu.dot_dimension_numbers<[1], [0], [0], [1], [0, 0, 1, 1], [], []>} : vector<8x4xbf16>, vector<4x512xbf16>, vector<8x512xf32> -> vector<8x512xf32>
    %c3_112 = arith.constant 3 : index
    %c1_113 = arith.constant 1 : index
    %c0_114 = arith.constant 0 : index
    %c0_115 = arith.constant 0 : index
    %74 = vector.load %arg2[%c3_112, %c1_113, %c0_114, %c0_115] : memref<4x4x8x4xbf16, #tpu.memory_space<vmem>>, vector<1x1x8x4xbf16>
    %75 = vector.shape_cast %74 : vector<1x1x8x4xbf16> to vector<8x4xbf16>
    %c1_116 = arith.constant 1 : index
    %c2_117 = arith.constant 2 : index
    %c0_118 = arith.constant 0 : index
    %c0_119 = arith.constant 0 : index
    %76 = vector.load %arg1[%c1_116, %c2_117, %c0_118, %c0_119] : memref<3x3x4x512xbf16, #tpu.memory_space<vmem>>, vector<1x1x4x512xbf16>
    %77 = vector.shape_cast %76 : vector<1x1x4x512xbf16> to vector<4x512xbf16>
    %cst_120 = arith.constant dense<0.000000e+00> : vector<8x512xf32>
    %78 = tpu.matmul %75, %77, %cst_120 {dimension_numbers = #tpu.dot_dimension_numbers<[1], [0], [0], [1], [0, 0, 1, 1], [], []>} : vector<8x4xbf16>, vector<4x512xbf16>, vector<8x512xf32> -> vector<8x512xf32>
    %79 = arith.addf %73, %78 : vector<8x512xf32>
    %c3_121 = arith.constant 3 : index
    %c2_122 = arith.constant 2 : index
    %c0_123 = arith.constant 0 : index
    %c0_124 = arith.constant 0 : index
    %80 = vector.load %arg2[%c3_121, %c2_122, %c0_123, %c0_124] : memref<4x4x8x4xbf16, #tpu.memory_space<vmem>>, vector<1x1x8x4xbf16>
    %81 = vector.shape_cast %80 : vector<1x1x8x4xbf16> to vector<8x4xbf16>
    %c2_125 = arith.constant 2 : index
    %c1_126 = arith.constant 1 : index
    %c0_127 = arith.constant 0 : index
    %c0_128 = arith.constant 0 : index
    %82 = vector.load %arg1[%c2_125, %c1_126, %c0_127, %c0_128] : memref<3x3x4x512xbf16, #tpu.memory_space<vmem>>, vector<1x1x4x512xbf16>
    %83 = vector.shape_cast %82 : vector<1x1x4x512xbf16> to vector<4x512xbf16>
    %cst_129 = arith.constant dense<0.000000e+00> : vector<8x512xf32>
    %84 = tpu.matmul %81, %83, %cst_129 {dimension_numbers = #tpu.dot_dimension_numbers<[1], [0], [0], [1], [0, 0, 1, 1], [], []>} : vector<8x4xbf16>, vector<4x512xbf16>, vector<8x512xf32> -> vector<8x512xf32>
    %85 = arith.addf %79, %84 : vector<8x512xf32>
    %c3_130 = arith.constant 3 : index
    %c3_131 = arith.constant 3 : index
    %c0_132 = arith.constant 0 : index
    %c0_133 = arith.constant 0 : index
    %86 = vector.load %arg2[%c3_130, %c3_131, %c0_132, %c0_133] : memref<4x4x8x4xbf16, #tpu.memory_space<vmem>>, vector<1x1x8x4xbf16>
    %87 = vector.shape_cast %86 : vector<1x1x8x4xbf16> to vector<8x4xbf16>
    %c2_134 = arith.constant 2 : index
    %c2_135 = arith.constant 2 : index
    %c0_136 = arith.constant 0 : index
    %c0_137 = arith.constant 0 : index
    %88 = vector.load %arg1[%c2_134, %c2_135, %c0_136, %c0_137] : memref<3x3x4x512xbf16, #tpu.memory_space<vmem>>, vector<1x1x4x512xbf16>
    %89 = vector.shape_cast %88 : vector<1x1x4x512xbf16> to vector<4x512xbf16>
    %cst_138 = arith.constant dense<0.000000e+00> : vector<8x512xf32>
    %90 = tpu.matmul %87, %89, %cst_138 {dimension_numbers = #tpu.dot_dimension_numbers<[1], [0], [0], [1], [0, 0, 1, 1], [], []>} : vector<8x4xbf16>, vector<4x512xbf16>, vector<8x512xf32> -> vector<8x512xf32>
    %91 = arith.addf %85, %90 : vector<8x512xf32>
    %92 = tpu.concatenate %22, %45, %68, %91 in 1 : vector<8x512xf32>, vector<8x512xf32>, vector<8x512xf32>, vector<8x512xf32> -> vector<8x2048xf32>
    %cst_139 = arith.constant dense<0.000000e+00> : vector<8xf32>
    %93 = vector.multi_reduction <add>, %92, %cst_139 [1] : vector<8x2048xf32> to vector<8xf32>
    %94 = vector.shape_cast %93 : vector<8xf32> to vector<8x1xf32>
    %95 = arith.mulf %92, %92 : vector<8x2048xf32>
    %cst_140 = arith.constant dense<0.000000e+00> : vector<8xf32>
    %96 = vector.multi_reduction <add>, %95, %cst_140 [1] : vector<8x2048xf32> to vector<8xf32>
    %97 = vector.shape_cast %96 : vector<8xf32> to vector<8x1xf32>
    %cst_141 = arith.constant 4.8828125E-4 : f32
    %98 = vector.broadcast %cst_141 : f32 to vector<8x1xf32>
    %99 = arith.mulf %94, %98 : vector<8x1xf32>
    %cst_142 = arith.constant 4.8828125E-4 : f32
    %100 = vector.broadcast %cst_142 : f32 to vector<8x1xf32>
    %101 = arith.mulf %97, %100 : vector<8x1xf32>
    %102 = arith.mulf %99, %99 : vector<8x1xf32>
    %103 = arith.subf %101, %102 : vector<8x1xf32>
    %c0_143 = arith.constant 0 : index
    %c0_144 = arith.constant 0 : index
    %c0_145 = arith.constant 0 : index
    %104 = vector.load %arg3[%c0_143, %c0_144, %c0_145] : memref<2x8x1xf32, #tpu.memory_space<vmem>>, vector<1x8x1xf32>
    %105 = vector.shape_cast %104 : vector<1x8x1xf32> to vector<8x1xf32>
    %cst_146 = arith.constant 9.99999974E-6 : f32
    %106 = vector.broadcast %cst_146 : f32 to vector<8x1xf32>
    %107 = arith.addf %103, %106 : vector<8x1xf32>
    %108 = math.rsqrt %107 : vector<8x1xf32>
    %109 = arith.mulf %105, %108 : vector<8x1xf32>
    %c1_147 = arith.constant 1 : index
    %c0_148 = arith.constant 0 : index
    %c0_149 = arith.constant 0 : index
    %110 = vector.load %arg3[%c1_147, %c0_148, %c0_149] : memref<2x8x1xf32, #tpu.memory_space<vmem>>, vector<1x8x1xf32>
    %111 = vector.shape_cast %110 : vector<1x8x1xf32> to vector<8x1xf32>
    %112 = arith.mulf %99, %109 : vector<8x1xf32>
    %113 = arith.subf %111, %112 : vector<8x1xf32>
    %114 = vector.broadcast %109 : vector<8x1xf32> to vector<8x2048xf32>
    %115 = arith.mulf %92, %114 : vector<8x2048xf32>
    %116 = vector.broadcast %113 : vector<8x1xf32> to vector<8x2048xf32>
    %117 = arith.addf %115, %116 : vector<8x2048xf32>
    %cst_150 = arith.constant 0.000000e+00 : f32
    %118 = vector.broadcast %cst_150 : f32 to vector<8x2048xf32>
    %119 = arith.maximumf %117, %118 : vector<8x2048xf32>
    %c0_151 = arith.constant 0 : index
    %c0_152 = arith.constant 0 : index
    %120 = vector.load %arg4[%c0_151, %c0_152] : memref<8x2048xf32, #tpu.memory_space<vmem>>, vector<8x2048xf32>
    tpu.vector_store %arg4[%c0_151, %c0_152], %119 {strides = array<i32>} : memref<8x2048xf32, #tpu.memory_space<vmem>>, vector<8x2048xf32>,
    return
  }
  func.func @transform_0(%arg0: i32) -> (i32, i32, i32, i32) {
    %c0_i32 = arith.constant 0 : i32
    %c0_i32_0 = arith.constant 0 : i32
    %c0_i32_1 = arith.constant 0 : i32
    %c0_i32_2 = arith.constant 0 : i32
    %c0_i32_3 = arith.constant 0 : i32
    return %c0_i32, %c0_i32_0, %c0_i32_1, %c0_i32_2 : i32, i32, i32, i32
  }
  func.func @transform_1(%arg0: i32) -> (i32, i32, i32, i32) {
    %c0_i32 = arith.constant 0 : i32
    %c0_i32_0 = arith.constant 0 : i32
    %c0_i32_1 = arith.constant 0 : i32
    %c0_i32_2 = arith.constant 0 : i32
    %c0_i32_3 = arith.constant 0 : i32
    return %c0_i32, %c0_i32_0, %c0_i32_1, %c0_i32_2 : i32, i32, i32, i32
  }
  func.func @transform_2(%arg0: i32) -> (i32, i32, i32) {
    %c0_i32 = arith.constant 0 : i32
    %c0_i32_0 = arith.constant 0 : i32
    %c0_i32_1 = arith.constant 0 : i32
    %c0_i32_2 = arith.constant 0 : i32
    return %c0_i32, %c0_i32_0, %c0_i32_1 : i32, i32, i32
  }
  func.func @transform_3(%arg0: i32) -> (i32, i32) {
    %c0_i32 = arith.constant 0 : i32
    %c0_i32_0 = arith.constant 0 : i32
    %c0_i32_1 = arith.constant 0 : i32
    return %c0_i32, %c0_i32_0 : i32, i32
  }
}

</mosaic_0001>

<llo_original>
// kernel: upsample2d_forward.1
$region0: #{upsample2d_forward.1}
  #allocation0 [shape = 'u32[]', space=smem, size = 0x4, offset = 0x4, fixed_abs, tag = 'smem constant byte address 0x4 - core index']
  #allocation1 [shape = 'u32[144,128]{1,0:T(1,128)}', space=vmem, size = 0x12000, scoped, tag = 'internal scratch']
  %s0 = inlined_call_operand.vmem [shape: bf16[3,3,4,512], index: 0, kind: input, shape index: {}]
  %s1 = inlined_call_operand.vmem [shape: bf16[4,4,8,4], index: 1, kind: input, shape index: {}]
  %s2 = inlined_call_operand.vmem [shape: f32[2,8,1], index: 2, kind: input, shape index: {}]
  %s3 = inlined_call_operand.vmem [shape: f32[8,2048], index: 3, kind: output, shape index: {}]
  %s4 = sld [smem:[#allocation0]]
  $region22: #{upsample2d_forward.1} parent=0
    _
  %s6 = ssub.s32 1, %s4
  %s7 = scalar_select 0, %s6, %s4
  // Predicated region
  $region2: #{upsample2d_forward.1} parent=0 // pred_check
    _
  $region3: #{upsample2d_forward.1} parent=0 // pred_check_branch
    %9 = sbr.rel (0) target = $region5
  $region4: #{upsample2d_forward.1} parent=0 // pred_region
    _
  $region5: #{upsample2d_forward.1} parent=0 // pred_fallthru
    _
  // Predicated region
  $region6: #{upsample2d_forward.1} parent=0 // pred_check
    _
  $region7: #{upsample2d_forward.1} parent=0 // pred_check_branch
    %11 = sbr.rel (0) target = $region9
  $region8: #{upsample2d_forward.1} parent=0 // pred_region
    _
  $region9: #{upsample2d_forward.1} parent=0 // pred_fallthru
    _
  // Predicated region
  $region10: #{upsample2d_forward.1} parent=0 // pred_check
    _
  $region11: #{upsample2d_forward.1} parent=0 // pred_check_branch
    %13 = sbr.rel (0) target = $region13
  $region12: #{upsample2d_forward.1} parent=0 // pred_region
    _
  $region13: #{upsample2d_forward.1} parent=0 // pred_fallthru
    _
  %v15 = vld [vmem:[%s1] sm:$0xf]
  %v16 = vld [vmem:[%s0] sm:$0xff]
  %s17 = scalar_lea.vmem %s1, 4
  %v18 = vld [vmem:[%s17] sm:$0xf]
  %s19 = scalar_lea.vmem %s0, 8
  %v20 = vld [vmem:[%s19] sm:$0xff]
  %v22 = vcombine.high %v20, %v20
  %v24 = vunpack.c.l.s4 1983009808
  %v25 = vunpack.c.0.s8 %v24
  %v26 = vlaneseq
  %v27 = vshrl.u32 %v26, 7
  %v28 = vsub.s32 %v25, %v27
  %v29 = vrot.slane %v20, %v28
  %v31 = vunpack.c.l.s4 1983009808
  %v32 = vunpack.c.0.s8 %v31
  %v33 = vlaneseq
  %v34 = vshrl.u32 %v33, 7
  %v35 = vsub.s32 %v32, %v34
  %v36 = vrot.slane %v22, %v35
  %v37 = vcombine.high %v29, %v29
  %v38 = vcombine.high %v36, %v36
  %vm39 = vcmask 31744
  %v41 = vsel %vm39, %v18, 0
  %vm43 = vcmask 1041408
  %v45 = vsel %vm43, %v29, 0
  %v48 = vsel %vm43, %v37, 0
  %v51 = vsel %vm43, %v36, 0
  %v54 = vsel %vm43, %v38, 0
  %56 = vmatprep.subr.bf16.mxu0 0
  %57 = vmatpush1.bf16.msra.mxu0 0
  %58 = vmatprep.subr.bf16.mxu0 0
  %59 = vmatpush1.bf16.msra.mxu0 0
  %60 = vmatprep.subr.bf16.mxu0 0
  %61 = vmatpush1.bf16.msra.mxu0 0
  %62 = vmatprep.subr.bf16.mxu0 0
  %63 = vmatpush1.bf16.msra.mxu0 0
  %64 = vmatprep.subr.bf16.mxu0 0
  %65 = vmatpush1.bf16.msra.mxu0 0
  %66 = vmatprep.subr.bf16.mxu0 0
  %67 = vmatpush1.bf16.msra.mxu0 0
  %68 = vmatprep.subr.bf16.mxu0 0
  %69 = vmatpush1.bf16.msra.mxu0 0
  %70 = vmatprep.subr.bf16.mxu0 %v48
  %71 = vmatpush1.bf16.msra.mxu0 %v45
  %72 = vmatprep.subr.bf16.mxu0 0
  %73 = vmatpush2.bf16.msra.mxu0 0
  %74 = vmatprep.subr.bf16.mxu0 0
  %75 = vmatpush2.bf16.msra.mxu0 0
  %76 = vmatprep.subr.bf16.mxu0 0
  %77 = vmatpush2.bf16.msra.mxu0 0
  %78 = vmatprep.subr.bf16.mxu0 0
  %79 = vmatpush2.bf16.msra.mxu0 0
  %80 = vmatprep.subr.bf16.mxu0 0
  %81 = vmatpush2.bf16.msra.mxu0 0
  %82 = vmatprep.subr.bf16.mxu0 0
  %83 = vmatpush2.bf16.msra.mxu0 0
  %84 = vmatprep.subr.bf16.mxu0 0
  %85 = vmatpush2.bf16.msra.mxu0 0
  %86 = vmatprep.subr.bf16.mxu0 0
  %87 = vmatpush2.bf16.msra.mxu0 0
  %88 = vmatprep.mubr.bf16.mxu0 0
  %89 = vmatmul.mubr.bf16.gmra.mxu0 %v41
  %v90 = vpop.f32.mrf.mxu0
  %v91 = vadd.f32 0.0, %v90
  %v92 = vpop.f32.mrf.mxu0
  %v93 = vadd.f32 0.0, %v92
  %v94 = vpop.f32.mrf.mxu0
  %v95 = vpop.f32.mrf.mxu0
  %96 = vdwg.mxu0
  %97 = vmatprep.subr.bf16.mxu0 0
  %98 = vmatpush1.bf16.msra.mxu0 0
  %99 = vmatprep.subr.bf16.mxu0 0
  %100 = vmatpush1.bf16.msra.mxu0 0
  %101 = vmatprep.subr.bf16.mxu0 0
  %102 = vmatpush1.bf16.msra.mxu0 0
  %103 = vmatprep.subr.bf16.mxu0 0
  %104 = vmatpush1.bf16.msra.mxu0 0
  %105 = vmatprep.subr.bf16.mxu0 0
  %106 = vmatpush1.bf16.msra.mxu0 0
  %107 = vmatprep.subr.bf16.mxu0 0
  %108 = vmatpush1.bf16.msra.mxu0 0
  %109 = vmatprep.subr.bf16.mxu0 0
  %110 = vmatpush1.bf16.msra.mxu0 0
  %111 = vmatprep.subr.bf16.mxu0 %v54
  %112 = vmatpush1.bf16.msra.mxu0 %v51
  %113 = vmatprep.subr.bf16.mxu0 0
  %114 = vmatpush2.bf16.msra.mxu0 0
  %115 = vmatprep.subr.bf16.mxu0 0
  %116 = vmatpush2.bf16.msra.mxu0 0
  %117 = vmatprep.subr.bf16.mxu0 0
  %118 = vmatpush2.bf16.msra.mxu0 0
  %119 = vmatprep.subr.bf16.mxu0 0
  %120 = vmatpush2.bf16.msra.mxu0 0
  %121 = vmatprep.subr.bf16.mxu0 0
  %122 = vmatpush2.bf16.msra.mxu0 0
  %123 = vmatprep.subr.bf16.mxu0 0
  %124 = vmatpush2.bf16.msra.mxu0 0
  %125 = vmatprep.subr.bf16.mxu0 0
  %126 = vmatpush2.bf16.msra.mxu0 0
  %127 = vmatprep.subr.bf16.mxu0 0
  %128 = vmatpush2.bf16.msra.mxu0 0
  %129 = vmatprep.mubr.bf16.mxu0 0
  %130 = vmatmul.mubr.bf16.gmra.mxu0 %v41
  %v131 = vpop.f32.mrf.mxu0
  %v132 = vadd.f32 0.0, %v131
  %v133 = vpop.f32.mrf.mxu0
  %v134 = vadd.f32 0.0, %v133
  %v135 = vpop.f32.mrf.mxu0
  %v136 = vpop.f32.mrf.mxu0
  %137 = vdwg.mxu0
  %v139 = vcombine.high %v16, %v16
  %v141 = vunpack.c.l.s4 1983009808
  %v142 = vunpack.c.0.s8 %v141
  %v143 = vlaneseq
  %v144 = vshrl.u32 %v143, 7
  %v145 = vsub.s32 %v142, %v144
  %v146 = vrot.slane %v16, %v145
  %v148 = vunpack.c.l.s4 1983009808
  %v149 = vunpack.c.0.s8 %v148
  %v150 = vlaneseq
  %v151 = vshrl.u32 %v150, 7
  %v152 = vsub.s32 %v149, %v151
  %v153 = vrot.slane %v139, %v152
  %v154 = vcombine.high %v146, %v146
  %v155 = vcombine.high %v153, %v153
  %v157 = vsel %vm39, %v15, 0
  %v160 = vsel %vm43, %v146, 0
  %v163 = vsel %vm43, %v154, 0
  %v166 = vsel %vm43, %v153, 0
  %v169 = vsel %vm43, %v155, 0
  %171 = vmatprep.subr.bf16.mxu0 0
  %172 = vmatpush1.bf16.msra.mxu0 0
  %173 = vmatprep.subr.bf16.mxu0 0
  %174 = vmatpush1.bf16.msra.mxu0 0
  %175 = vmatprep.subr.bf16.mxu0 0
  %176 = vmatpush1.bf16.msra.mxu0 0
  %177 = vmatprep.subr.bf16.mxu0 0
  %178 = vmatpush1.bf16.msra.mxu0 0
  %179 = vmatprep.subr.bf16.mxu0 0
  %180 = vmatpush1.bf16.msra.mxu0 0
  %181 = vmatprep.subr.bf16.mxu0 0
  %182 = vmatpush1.bf16.msra.mxu0 0
  %183 = vmatprep.subr.bf16.mxu0 0
  %184 = vmatpush1.bf16.msra.mxu0 0
  %185 = vmatprep.subr.bf16.mxu0 %v163
  %186 = vmatpush1.bf16.msra.mxu0 %v160
  %187 = vmatprep.subr.bf16.mxu0 0
  %188 = vmatpush2.bf16.msra.mxu0 0
  %189 = vmatprep.subr.bf16.mxu0 0
  %190 = vmatpush2.bf16.msra.mxu0 0
  %191 = vmatprep.subr.bf16.mxu0 0
  %192 = vmatpush2.bf16.msra.mxu0 0
  %193 = vmatprep.subr.bf16.mxu0 0
  %194 = vmatpush2.bf16.msra.mxu0 0
  %195 = vmatprep.subr.bf16.mxu0 0
  %196 = vmatpush2.bf16.msra.mxu0 0
  %197 = vmatprep.subr.bf16.mxu0 0
  %198 = vmatpush2.bf16.msra.mxu0 0
  %199 = vmatprep.subr.bf16.mxu0 0
  %200 = vmatpush2.bf16.msra.mxu0 0
  %201 = vmatprep.subr.bf16.mxu0 0
  %202 = vmatpush2.bf16.msra.mxu0 0
  %203 = vmatprep.mubr.bf16.mxu0 0
  %204 = vmatmul.mubr.bf16.gmra.mxu0 %v157
  %v205 = vpop.f32.mrf.mxu0
  %v206 = vadd.f32 %v91, %v205
  %v207 = vpop.f32.mrf.mxu0
  %v208 = vadd.f32 %v93, %v207
  %v209 = vpop.f32.mrf.mxu0
  %v210 = vpop.f32.mrf.mxu0
  %211 = vdwg.mxu0
  %212 = vmatprep.subr.bf16.mxu0 0
  %213 = vmatpush1.bf16.msra.mxu0 0
  %214 = vmatprep.subr.bf16.mxu0 0
  %215 = vmatpush1.bf16.msra.mxu0 0
  %216 = vmatprep.subr.bf16.mxu0 0
  %217 = vmatpush1.bf16.msra.mxu0 0
  %218 = vmatprep.subr.bf16.mxu0 0
  %219 = vmatpush1.bf16.msra.mxu0 0
  %220 = vmatprep.subr.bf16.mxu0 0
  %221 = vmatpush1.bf16.msra.mxu0 0
  %222 = vmatprep.subr.bf16.mxu0 0
  %223 = vmatpush1.bf16.msra.mxu0 0
  %224 = vmatprep.subr.bf16.mxu0 0
  %225 = vmatpush1.bf16.msra.mxu0 0
  %226 = vmatprep.subr.bf16.mxu0 %v169
  %227 = vmatpush1.bf16.msra.mxu0 %v166
  %228 = vmatprep.subr.bf16.mxu0 0
  %229 = vmatpush2.bf16.msra.mxu0 0
  %230 = vmatprep.subr.bf16.mxu0 0
  %231 = vmatpush2.bf16.msra.mxu0 0
  %232 = vmatprep.subr.bf16.mxu0 0
  %233 = vmatpush2.bf16.msra.mxu0 0
  %234 = vmatprep.subr.bf16.mxu0 0
  %235 = vmatpush2.bf16.msra.mxu0 0
  %236 = vmatprep.subr.bf16.mxu0 0
  %237 = vmatpush2.bf16.msra.mxu0 0
  %238 = vmatprep.subr.bf16.mxu0 0
  %239 = vmatpush2.bf16.msra.mxu0 0
  %240 = vmatprep.subr.bf16.mxu0 0
  %241 = vmatpush2.bf16.msra.mxu0 0
  %242 = vmatprep.subr.bf16.mxu0 0
  %243 = vmatpush2.bf16.msra.mxu0 0
  %244 = vmatprep.mubr.bf16.mxu0 0
  %245 = vmatmul.mubr.bf16.gmra.mxu0 %v157
  %v246 = vpop.f32.mrf.mxu0
  %v247 = vadd.f32 %v132, %v246
  %v248 = vpop.f32.mrf.mxu0
  %v249 = vadd.f32 %v134, %v248
  %v250 = vpop.f32.mrf.mxu0
  %v251 = vpop.f32.mrf.mxu0
  %252 = vdwg.mxu0
  %s253 = scalar_lea.vmem %s1, 8
  %v254 = vld [vmem:[%s253] sm:$0xf]
  %s255 = scalar_lea.vmem %s0, 24
  %v256 = vld [vmem:[%s255] sm:$0xff]
  %v258 = vcombine.high %v256, %v256
  %v260 = vunpack.c.l.s4 1983009808
  %v261 = vunpack.c.0.s8 %v260
  %v262 = vlaneseq
  %v263 = vshrl.u32 %v262, 7
  %v264 = vsub.s32 %v261, %v263
  %v265 = vrot.slane %v256, %v264
  %v267 = vunpack.c.l.s4 1983009808
  %v268 = vunpack.c.0.s8 %v267
  %v269 = vlaneseq
  %v270 = vshrl.u32 %v269, 7
  %v271 = vsub.s32 %v268, %v270
  %v272 = vrot.slane %v258, %v271
  %v273 = vcombine.high %v265, %v265
  %v274 = vcombine.high %v272, %v272
  %v276 = vsel %vm39, %v254, 0
  %v279 = vsel %vm43, %v265, 0
  %v282 = vsel %vm43, %v273, 0
  %v285 = vsel %vm43, %v272, 0
  %v288 = vsel %vm43, %v274, 0
  %290 = vmatprep.subr.bf16.mxu0 0
  %291 = vmatpush1.bf16.msra.mxu0 0
  %292 = vmatprep.subr.bf16.mxu0 0
  %293 = vmatpush1.bf16.msra.mxu0 0
  %294 = vmatprep.subr.bf16.mxu0 0
  %295 = vmatpush1.bf16.msra.mxu0 0
  %296 = vmatprep.subr.bf16.mxu0 0
  %297 = vmatpush1.bf16.msra.mxu0 0
  %298 = vmatprep.subr.bf16.mxu0 0
  %299 = vmatpush1.bf16.msra.mxu0 0
  %300 = vmatprep.subr.bf16.mxu0 0
  %301 = vmatpush1.bf16.msra.mxu0 0
  %302 = vmatprep.subr.bf16.mxu0 0
  %303 = vmatpush1.bf16.msra.mxu0 0
  %304 = vmatprep.subr.bf16.mxu0 %v282
  %305 = vmatpush1.bf16.msra.mxu0 %v279
  %306 = vmatprep.subr.bf16.mxu0 0
  %307 = vmatpush2.bf16.msra.mxu0 0
  %308 = vmatprep.subr.bf16.mxu0 0
  %309 = vmatpush2.bf16.msra.mxu0 0
  %310 = vmatprep.subr.bf16.mxu0 0
  %311 = vmatpush2.bf16.msra.mxu0 0
  %312 = vmatprep.subr.bf16.mxu0 0
  %313 = vmatpush2.bf16.msra.mxu0 0
  %314 = vmatprep.subr.bf16.mxu0 0
  %315 = vmatpush2.bf16.msra.mxu0 0
  %316 = vmatprep.subr.bf16.mxu0 0
  %317 = vmatpush2.bf16.msra.mxu0 0
  %318 = vmatprep.subr.bf16.mxu0 0
  %319 = vmatpush2.bf16.msra.mxu0 0
  %320 = vmatprep.subr.bf16.mxu0 0
  %321 = vmatpush2.bf16.msra.mxu0 0
  %322 = vmatprep.mubr.bf16.mxu0 0
  %323 = vmatmul.mubr.bf16.gmra.mxu0 %v276
  %v324 = vpop.f32.mrf.mxu0
  %v325 = vadd.f32 0.0, %v324
  %v326 = vpop.f32.mrf.mxu0
  %v327 = vadd.f32 0.0, %v326
  %v328 = vpop.f32.mrf.mxu0
  %v329 = vpop.f32.mrf.mxu0
  %330 = vdwg.mxu0
  %331 = vmatprep.subr.bf16.mxu0 0
  %332 = vmatpush1.bf16.msra.mxu0 0
  %333 = vmatprep.subr.bf16.mxu0 0
  %334 = vmatpush1.bf16.msra.mxu0 0
  %335 = vmatprep.subr.bf16.mxu0 0
  %336 = vmatpush1.bf16.msra.mxu0 0
  %337 = vmatprep.subr.bf16.mxu0 0
  %338 = vmatpush1.bf16.msra.mxu0 0
  %339 = vmatprep.subr.bf16.mxu0 0
  %340 = vmatpush1.bf16.msra.mxu0 0
  %341 = vmatprep.subr.bf16.mxu0 0
  %342 = vmatpush1.bf16.msra.mxu0 0
  %343 = vmatprep.subr.bf16.mxu0 0
  %344 = vmatpush1.bf16.msra.mxu0 0
  %345 = vmatprep.subr.bf16.mxu0 %v288
  %346 = vmatpush1.bf16.msra.mxu0 %v285
  %347 = vmatprep.subr.bf16.mxu0 0
  %348 = vmatpush2.bf16.msra.mxu0 0
  %349 = vmatprep.subr.bf16.mxu0 0
  %350 = vmatpush2.bf16.msra.mxu0 0
  %351 = vmatprep.subr.bf16.mxu0 0
  %352 = vmatpush2.bf16.msra.mxu0 0
  %353 = vmatprep.subr.bf16.mxu0 0
  %354 = vmatpush2.bf16.msra.mxu0 0
  %355 = vmatprep.subr.bf16.mxu0 0
  %356 = vmatpush2.bf16.msra.mxu0 0
  %357 = vmatprep.subr.bf16.mxu0 0
  %358 = vmatpush2.bf16.msra.mxu0 0
  %359 = vmatprep.subr.bf16.mxu0 0
  %360 = vmatpush2.bf16.msra.mxu0 0
  %361 = vmatprep.subr.bf16.mxu0 0
  %362 = vmatpush2.bf16.msra.mxu0 0
  %363 = vmatprep.mubr.bf16.mxu0 0
  %364 = vmatmul.mubr.bf16.gmra.mxu0 %v276
  %v365 = vpop.f32.mrf.mxu0
  %v366 = vadd.f32 0.0, %v365
  %v367 = vpop.f32.mrf.mxu0
  %v368 = vadd.f32 0.0, %v367
  %v369 = vpop.f32.mrf.mxu0
  %v370 = vpop.f32.mrf.mxu0
  %371 = vdwg.mxu0
  %v372 = vadd.f32 %v206, %v325
  %v373 = vadd.f32 %v208, %v327
  %v374 = vadd.f32 %v247, %v366
  %v375 = vadd.f32 %v249, %v368
  %s376 = scalar_lea.vmem %s1, 12
  %v377 = vld [vmem:[%s376] sm:$0xf]
  %s378 = scalar_lea.vmem %s0, 32
  %v379 = vld [vmem:[%s378] sm:$0xff]
  %v381 = vcombine.high %v379, %v379
  %v383 = vunpack.c.l.s4 1983009808
  %v384 = vunpack.c.0.s8 %v383
  %v385 = vlaneseq
  %v386 = vshrl.u32 %v385, 7
  %v387 = vsub.s32 %v384, %v386
  %v388 = vrot.slane %v379, %v387
  %v390 = vunpack.c.l.s4 1983009808
  %v391 = vunpack.c.0.s8 %v390
  %v392 = vlaneseq
  %v393 = vshrl.u32 %v392, 7
  %v394 = vsub.s32 %v391, %v393
  %v395 = vrot.slane %v381, %v394
  %v396 = vcombine.high %v388, %v388
  %v397 = vcombine.high %v395, %v395
  %v399 = vsel %vm39, %v377, 0
  %v402 = vsel %vm43, %v388, 0
  %v405 = vsel %vm43, %v396, 0
  %v408 = vsel %vm43, %v395, 0
  %v411 = vsel %vm43, %v397, 0
  %413 = vmatprep.subr.bf16.mxu0 0
  %414 = vmatpush1.bf16.msra.mxu0 0
  %415 = vmatprep.subr.bf16.mxu0 0
  %416 = vmatpush1.bf16.msra.mxu0 0
  %417 = vmatprep.subr.bf16.mxu0 0
  %418 = vmatpush1.bf16.msra.mxu0 0
  %419 = vmatprep.subr.bf16.mxu0 0
  %420 = vmatpush1.bf16.msra.mxu0 0
  %421 = vmatprep.subr.bf16.mxu0 0
  %422 = vmatpush1.bf16.msra.mxu0 0
  %423 = vmatprep.subr.bf16.mxu0 0
  %424 = vmatpush1.bf16.msra.mxu0 0
  %425 = vmatprep.subr.bf16.mxu0 0
  %426 = vmatpush1.bf16.msra.mxu0 0
  %427 = vmatprep.subr.bf16.mxu0 %v405
  %428 = vmatpush1.bf16.msra.mxu0 %v402
  %429 = vmatprep.subr.bf16.mxu0 0
  %430 = vmatpush2.bf16.msra.mxu0 0
  %431 = vmatprep.subr.bf16.mxu0 0
  %432 = vmatpush2.bf16.msra.mxu0 0
  %433 = vmatprep.subr.bf16.mxu0 0
  %434 = vmatpush2.bf16.msra.mxu0 0
  %435 = vmatprep.subr.bf16.mxu0 0
  %436 = vmatpush2.bf16.msra.mxu0 0
  %437 = vmatprep.subr.bf16.mxu0 0
  %438 = vmatpush2.bf16.msra.mxu0 0
  %439 = vmatprep.subr.bf16.mxu0 0
  %440 = vmatpush2.bf16.msra.mxu0 0
  %441 = vmatprep.subr.bf16.mxu0 0
  %442 = vmatpush2.bf16.msra.mxu0 0
  %443 = vmatprep.subr.bf16.mxu0 0
  %444 = vmatpush2.bf16.msra.mxu0 0
  %445 = vmatprep.mubr.bf16.mxu0 0
  %446 = vmatmul.mubr.bf16.gmra.mxu0 %v399
  %v447 = vpop.f32.mrf.mxu0
  %v448 = vadd.f32 0.0, %v447
  %v449 = vpop.f32.mrf.mxu0
  %v450 = vadd.f32 0.0, %v449
  %v451 = vpop.f32.mrf.mxu0
  %v452 = vpop.f32.mrf.mxu0
  %453 = vdwg.mxu0
  %454 = vmatprep.subr.bf16.mxu0 0
  %455 = vmatpush1.bf16.msra.mxu0 0
  %456 = vmatprep.subr.bf16.mxu0 0
  %457 = vmatpush1.bf16.msra.mxu0 0
  %458 = vmatprep.subr.bf16.mxu0 0
  %459 = vmatpush1.bf16.msra.mxu0 0
  %460 = vmatprep.subr.bf16.mxu0 0
  %461 = vmatpush1.bf16.msra.mxu0 0
  %462 = vmatprep.subr.bf16.mxu0 0
  %463 = vmatpush1.bf16.msra.mxu0 0
  %464 = vmatprep.subr.bf16.mxu0 0
  %465 = vmatpush1.bf16.msra.mxu0 0
  %466 = vmatprep.subr.bf16.mxu0 0
  %467 = vmatpush1.bf16.msra.mxu0 0
  %468 = vmatprep.subr.bf16.mxu0 %v411
  %469 = vmatpush1.bf16.msra.mxu0 %v408
  %470 = vmatprep.subr.bf16.mxu0 0
  %471 = vmatpush2.bf16.msra.mxu0 0
  %472 = vmatprep.subr.bf16.mxu0 0
  %473 = vmatpush2.bf16.msra.mxu0 0
  %474 = vmatprep.subr.bf16.mxu0 0
  %475 = vmatpush2.bf16.msra.mxu0 0
  %476 = vmatprep.subr.bf16.mxu0 0
  %477 = vmatpush2.bf16.msra.mxu0 0
  %478 = vmatprep.subr.bf16.mxu0 0
  %479 = vmatpush2.bf16.msra.mxu0 0
  %480 = vmatprep.subr.bf16.mxu0 0
  %481 = vmatpush2.bf16.msra.mxu0 0
  %482 = vmatprep.subr.bf16.mxu0 0
  %483 = vmatpush2.bf16.msra.mxu0 0
  %484 = vmatprep.subr.bf16.mxu0 0
  %485 = vmatpush2.bf16.msra.mxu0 0
  %486 = vmatprep.mubr.bf16.mxu0 0
  %487 = vmatmul.mubr.bf16.gmra.mxu0 %v399
  %v488 = vpop.f32.mrf.mxu0
  %v489 = vadd.f32 0.0, %v488
  %v490 = vpop.f32.mrf.mxu0
  %v491 = vadd.f32 0.0, %v490
  %v492 = vpop.f32.mrf.mxu0
  %v493 = vpop.f32.mrf.mxu0
  %494 = vdwg.mxu0
  %v495 = vadd.f32 %v372, %v448
  %v496 = vadd.f32 %v373, %v450
  %v497 = vadd.f32 %v374, %v489
  %v498 = vadd.f32 %v375, %v491
  %s499 = scalar_lea.vmem %s1, 16
  %v500 = vld [vmem:[%s499] sm:$0xf]
  %s501 = scalar_lea.vmem %s1, 20
  %v502 = vld [vmem:[%s501] sm:$0xf]
  %s503 = scalar_lea.vmem %s0, 16
  %v504 = vld [vmem:[%s503] sm:$0xff]
  %v506 = vcombine.high %v504, %v504
  %v508 = vunpack.c.l.s4 1983009808
  %v509 = vunpack.c.0.s8 %v508
  %v510 = vlaneseq
  %v511 = vshrl.u32 %v510, 7
  %v512 = vsub.s32 %v509, %v511
  %v513 = vrot.slane %v504, %v512
  %v515 = vunpack.c.l.s4 1983009808
  %v516 = vunpack.c.0.s8 %v515
  %v517 = vlaneseq
  %v518 = vshrl.u32 %v517, 7
  %v519 = vsub.s32 %v516, %v518
  %v520 = vrot.slane %v506, %v519
  %v521 = vcombine.high %v513, %v513
  %v522 = vcombine.high %v520, %v520
  %v524 = vsel %vm39, %v502, 0
  %v527 = vsel %vm43, %v513, 0
  %v530 = vsel %vm43, %v521, 0
  %v533 = vsel %vm43, %v520, 0
  %v536 = vsel %vm43, %v522, 0
  %538 = vmatprep.subr.bf16.mxu0 0
  %539 = vmatpush1.bf16.msra.mxu0 0
  %540 = vmatprep.subr.bf16.mxu0 0
  %541 = vmatpush1.bf16.msra.mxu0 0
  %542 = vmatprep.subr.bf16.mxu0 0
  %543 = vmatpush1.bf16.msra.mxu0 0
  %544 = vmatprep.subr.bf16.mxu0 0
  %545 = vmatpush1.bf16.msra.mxu0 0
  %546 = vmatprep.subr.bf16.mxu0 0
  %547 = vmatpush1.bf16.msra.mxu0 0
  %548 = vmatprep.subr.bf16.mxu0 0
  %549 = vmatpush1.bf16.msra.mxu0 0
  %550 = vmatprep.subr.bf16.mxu0 0
  %551 = vmatpush1.bf16.msra.mxu0 0
  %552 = vmatprep.subr.bf16.mxu0 %v530
  %553 = vmatpush1.bf16.msra.mxu0 %v527
  %554 = vmatprep.subr.bf16.mxu0 0
  %555 = vmatpush2.bf16.msra.mxu0 0
  %556 = vmatprep.subr.bf16.mxu0 0
  %557 = vmatpush2.bf16.msra.mxu0 0
  %558 = vmatprep.subr.bf16.mxu0 0
  %559 = vmatpush2.bf16.msra.mxu0 0
  %560 = vmatprep.subr.bf16.mxu0 0
  %561 = vmatpush2.bf16.msra.mxu0 0
  %562 = vmatprep.subr.bf16.mxu0 0
  %563 = vmatpush2.bf16.msra.mxu0 0
  %564 = vmatprep.subr.bf16.mxu0 0
  %565 = vmatpush2.bf16.msra.mxu0 0
  %566 = vmatprep.subr.bf16.mxu0 0
  %567 = vmatpush2.bf16.msra.mxu0 0
  %568 = vmatprep.subr.bf16.mxu0 0
  %569 = vmatpush2.bf16.msra.mxu0 0
  %570 = vmatprep.mubr.bf16.mxu0 0
  %571 = vmatmul.mubr.bf16.gmra.mxu0 %v524
  %v572 = vpop.f32.mrf.mxu0
  %v573 = vadd.f32 0.0, %v572
  %v574 = vpop.f32.mrf.mxu0
  %v575 = vadd.f32 0.0, %v574
  %v576 = vpop.f32.mrf.mxu0
  %v577 = vpop.f32.mrf.mxu0
  %578 = vdwg.mxu0
  %579 = vmatprep.subr.bf16.mxu0 0
  %580 = vmatpush1.bf16.msra.mxu0 0
  %581 = vmatprep.subr.bf16.mxu0 0
  %582 = vmatpush1.bf16.msra.mxu0 0
  %583 = vmatprep.subr.bf16.mxu0 0
  %584 = vmatpush1.bf16.msra.mxu0 0
  %585 = vmatprep.subr.bf16.mxu0 0
  %586 = vmatpush1.bf16.msra.mxu0 0
  %587 = vmatprep.subr.bf16.mxu0 0
  %588 = vmatpush1.bf16.msra.mxu0 0
  %589 = vmatprep.subr.bf16.mxu0 0
  %590 = vmatpush1.bf16.msra.mxu0 0
  %591 = vmatprep.subr.bf16.mxu0 0
  %592 = vmatpush1.bf16.msra.mxu0 0
  %593 = vmatprep.subr.bf16.mxu0 %v536
  %594 = vmatpush1.bf16.msra.mxu0 %v533
  %595 = vmatprep.subr.bf16.mxu0 0
  %596 = vmatpush2.bf16.msra.mxu0 0
  %597 = vmatprep.subr.bf16.mxu0 0
  %598 = vmatpush2.bf16.msra.mxu0 0
  %599 = vmatprep.subr.bf16.mxu0 0
  %600 = vmatpush2.bf16.msra.mxu0 0
  %601 = vmatprep.subr.bf16.mxu0 0
  %602 = vmatpush2.bf16.msra.mxu0 0
  %603 = vmatprep.subr.bf16.mxu0 0
  %604 = vmatpush2.bf16.msra.mxu0 0
  %605 = vmatprep.subr.bf16.mxu0 0
  %606 = vmatpush2.bf16.msra.mxu0 0
  %607 = vmatprep.subr.bf16.mxu0 0
  %608 = vmatpush2.bf16.msra.mxu0 0
  %609 = vmatprep.subr.bf16.mxu0 0
  %610 = vmatpush2.bf16.msra.mxu0 0
  %611 = vmatprep.mubr.bf16.mxu0 0
  %612 = vmatmul.mubr.bf16.gmra.mxu0 %v524
  %v613 = vpop.f32.mrf.mxu0
  %v614 = vadd.f32 0.0, %v613
  %v615 = vpop.f32.mrf.mxu0
  %v616 = vadd.f32 0.0, %v615
  %v617 = vpop.f32.mrf.mxu0
  %v618 = vpop.f32.mrf.mxu0
  %619 = vdwg.mxu0
  %v621 = vsel %vm39, %v500, 0
  %623 = vmatprep.subr.bf16.mxu0 0
  %624 = vmatpush1.bf16.msra.mxu0 0
  %625 = vmatprep.subr.bf16.mxu0 0
  %626 = vmatpush1.bf16.msra.mxu0 0
  %627 = vmatprep.subr.bf16.mxu0 0
  %628 = vmatpush1.bf16.msra.mxu0 0
  %629 = vmatprep.subr.bf16.mxu0 0
  %630 = vmatpush1.bf16.msra.mxu0 0
  %631 = vmatprep.subr.bf16.mxu0 0
  %632 = vmatpush1.bf16.msra.mxu0 0
  %633 = vmatprep.subr.bf16.mxu0 0
  %634 = vmatpush1.bf16.msra.mxu0 0
  %635 = vmatprep.subr.bf16.mxu0 0
  %636 = vmatpush1.bf16.msra.mxu0 0
  %637 = vmatprep.subr.bf16.mxu0 %v48
  %638 = vmatpush1.bf16.msra.mxu0 %v45
  %639 = vmatprep.subr.bf16.mxu0 0
  %640 = vmatpush2.bf16.msra.mxu0 0
  %641 = vmatprep.subr.bf16.mxu0 0
  %642 = vmatpush2.bf16.msra.mxu0 0
  %643 = vmatprep.subr.bf16.mxu0 0
  %644 = vmatpush2.bf16.msra.mxu0 0
  %645 = vmatprep.subr.bf16.mxu0 0
  %646 = vmatpush2.bf16.msra.mxu0 0
  %647 = vmatprep.subr.bf16.mxu0 0
  %648 = vmatpush2.bf16.msra.mxu0 0
  %649 = vmatprep.subr.bf16.mxu0 0
  %650 = vmatpush2.bf16.msra.mxu0 0
  %651 = vmatprep.subr.bf16.mxu0 0
  %652 = vmatpush2.bf16.msra.mxu0 0
  %653 = vmatprep.subr.bf16.mxu0 0
  %654 = vmatpush2.bf16.msra.mxu0 0
  %655 = vmatprep.mubr.bf16.mxu0 0
  %656 = vmatmul.mubr.bf16.gmra.mxu0 %v621
  %v657 = vpop.f32.mrf.mxu0
  %v658 = vadd.f32 %v573, %v657
  %v659 = vpop.f32.mrf.mxu0
  %v660 = vadd.f32 %v575, %v659
  %v661 = vpop.f32.mrf.mxu0
  %v662 = vpop.f32.mrf.mxu0
  %663 = vdwg.mxu0
  %664 = vmatprep.subr.bf16.mxu0 0
  %665 = vmatpush1.bf16.msra.mxu0 0
  %666 = vmatprep.subr.bf16.mxu0 0
  %667 = vmatpush1.bf16.msra.mxu0 0
  %668 = vmatprep.subr.bf16.mxu0 0
  %669 = vmatpush1.bf16.msra.mxu0 0
  %670 = vmatprep.subr.bf16.mxu0 0
  %671 = vmatpush1.bf16.msra.mxu0 0
  %672 = vmatprep.subr.bf16.mxu0 0
  %673 = vmatpush1.bf16.msra.mxu0 0
  %674 = vmatprep.subr.bf16.mxu0 0
  %675 = vmatpush1.bf16.msra.mxu0 0
  %676 = vmatprep.subr.bf16.mxu0 0
  %677 = vmatpush1.bf16.msra.mxu0 0
  %678 = vmatprep.subr.bf16.mxu0 %v54
  %679 = vmatpush1.bf16.msra.mxu0 %v51
  %680 = vmatprep.subr.bf16.mxu0 0
  %681 = vmatpush2.bf16.msra.mxu0 0
  %682 = vmatprep.subr.bf16.mxu0 0
  %683 = vmatpush2.bf16.msra.mxu0 0
  %684 = vmatprep.subr.bf16.mxu0 0
  %685 = vmatpush2.bf16.msra.mxu0 0
  %686 = vmatprep.subr.bf16.mxu0 0
  %687 = vmatpush2.bf16.msra.mxu0 0
  %688 = vmatprep.subr.bf16.mxu0 0
  %689 = vmatpush2.bf16.msra.mxu0 0
  %690 = vmatprep.subr.bf16.mxu0 0
  %691 = vmatpush2.bf16.msra.mxu0 0
  %692 = vmatprep.subr.bf16.mxu0 0
  %693 = vmatpush2.bf16.msra.mxu0 0
  %694 = vmatprep.subr.bf16.mxu0 0
  %695 = vmatpush2.bf16.msra.mxu0 0
  %696 = vmatprep.mubr.bf16.mxu0 0
  %697 = vmatmul.mubr.bf16.gmra.mxu0 %v621
  %v698 = vpop.f32.mrf.mxu0
  %v699 = vadd.f32 %v614, %v698
  %v700 = vpop.f32.mrf.mxu0
  %v701 = vadd.f32 %v616, %v700
  %v702 = vpop.f32.mrf.mxu0
  %v703 = vpop.f32.mrf.mxu0
  %704 = vdwg.mxu0
  %s705 = scalar_lea.vmem %s1, 24
  %v706 = vld [vmem:[%s705] sm:$0xf]
  %v708 = vsel %vm39, %v706, 0
  %710 = vmatprep.subr.bf16.mxu0 0
  %711 = vmatpush1.bf16.msra.mxu0 0
  %712 = vmatprep.subr.bf16.mxu0 0
  %713 = vmatpush1.bf16.msra.mxu0 0
  %714 = vmatprep.subr.bf16.mxu0 0
  %715 = vmatpush1.bf16.msra.mxu0 0
  %716 = vmatprep.subr.bf16.mxu0 0
  %717 = vmatpush1.bf16.msra.mxu0 0
  %718 = vmatprep.subr.bf16.mxu0 0
  %719 = vmatpush1.bf16.msra.mxu0 0
  %720 = vmatprep.subr.bf16.mxu0 0
  %721 = vmatpush1.bf16.msra.mxu0 0
  %722 = vmatprep.subr.bf16.mxu0 0
  %723 = vmatpush1.bf16.msra.mxu0 0
  %724 = vmatprep.subr.bf16.mxu0 %v405
  %725 = vmatpush1.bf16.msra.mxu0 %v402
  %726 = vmatprep.subr.bf16.mxu0 0
  %727 = vmatpush2.bf16.msra.mxu0 0
  %728 = vmatprep.subr.bf16.mxu0 0
  %729 = vmatpush2.bf16.msra.mxu0 0
  %730 = vmatprep.subr.bf16.mxu0 0
  %731 = vmatpush2.bf16.msra.mxu0 0
  %732 = vmatprep.subr.bf16.mxu0 0
  %733 = vmatpush2.bf16.msra.mxu0 0
  %734 = vmatprep.subr.bf16.mxu0 0
  %735 = vmatpush2.bf16.msra.mxu0 0
  %736 = vmatprep.subr.bf16.mxu0 0
  %737 = vmatpush2.bf16.msra.mxu0 0
  %738 = vmatprep.subr.bf16.mxu0 0
  %739 = vmatpush2.bf16.msra.mxu0 0
  %740 = vmatprep.subr.bf16.mxu0 0
  %741 = vmatpush2.bf16.msra.mxu0 0
  %742 = vmatprep.mubr.bf16.mxu0 0
  %743 = vmatmul.mubr.bf16.gmra.mxu0 %v708
  %v744 = vpop.f32.mrf.mxu0
  %v745 = vadd.f32 0.0, %v744
  %v746 = vpop.f32.mrf.mxu0
  %v747 = vadd.f32 0.0, %v746
  %v748 = vpop.f32.mrf.mxu0
  %v749 = vpop.f32.mrf.mxu0
  %750 = vdwg.mxu0
  %751 = vmatprep.subr.bf16.mxu0 0
  %752 = vmatpush1.bf16.msra.mxu0 0
  %753 = vmatprep.subr.bf16.mxu0 0
  %754 = vmatpush1.bf16.msra.mxu0 0
  %755 = vmatprep.subr.bf16.mxu0 0
  %756 = vmatpush1.bf16.msra.mxu0 0
  %757 = vmatprep.subr.bf16.mxu0 0
  %758 = vmatpush1.bf16.msra.mxu0 0
  %759 = vmatprep.subr.bf16.mxu0 0
  %760 = vmatpush1.bf16.msra.mxu0 0
  %761 = vmatprep.subr.bf16.mxu0 0
  %762 = vmatpush1.bf16.msra.mxu0 0
  %763 = vmatprep.subr.bf16.mxu0 0
  %764 = vmatpush1.bf16.msra.mxu0 0
  %765 = vmatprep.subr.bf16.mxu0 %v411
  %766 = vmatpush1.bf16.msra.mxu0 %v408
  %767 = vmatprep.subr.bf16.mxu0 0
  %768 = vmatpush2.bf16.msra.mxu0 0
  %769 = vmatprep.subr.bf16.mxu0 0
  %770 = vmatpush2.bf16.msra.mxu0 0
  %771 = vmatprep.subr.bf16.mxu0 0
  %772 = vmatpush2.bf16.msra.mxu0 0
  %773 = vmatprep.subr.bf16.mxu0 0
  %774 = vmatpush2.bf16.msra.mxu0 0
  %775 = vmatprep.subr.bf16.mxu0 0
  %776 = vmatpush2.bf16.msra.mxu0 0
  %777 = vmatprep.subr.bf16.mxu0 0
  %778 = vmatpush2.bf16.msra.mxu0 0
  %779 = vmatprep.subr.bf16.mxu0 0
  %780 = vmatpush2.bf16.msra.mxu0 0
  %781 = vmatprep.subr.bf16.mxu0 0
  %782 = vmatpush2.bf16.msra.mxu0 0
  %783 = vmatprep.mubr.bf16.mxu0 0
  %784 = vmatmul.mubr.bf16.gmra.mxu0 %v708
  %v785 = vpop.f32.mrf.mxu0
  %v786 = vadd.f32 0.0, %v785
  %v787 = vpop.f32.mrf.mxu0
  %v788 = vadd.f32 0.0, %v787
  %v789 = vpop.f32.mrf.mxu0
  %v790 = vpop.f32.mrf.mxu0
  %791 = vdwg.mxu0
  %v792 = vadd.f32 %v658, %v745
  %v793 = vadd.f32 %v660, %v747
  %v794 = vadd.f32 %v699, %v786
  %v795 = vadd.f32 %v701, %v788
  %s796 = scalar_lea.vmem %s1, 28
  %v797 = vld [vmem:[%s796] sm:$0xf]
  %s798 = scalar_lea.vmem %s0, 40
  %v799 = vld [vmem:[%s798] sm:$0xff]
  %v801 = vcombine.high %v799, %v799
  %v803 = vunpack.c.l.s4 1983009808
  %v804 = vunpack.c.0.s8 %v803
  %v805 = vlaneseq
  %v806 = vshrl.u32 %v805, 7
  %v807 = vsub.s32 %v804, %v806
  %v808 = vrot.slane %v799, %v807
  %v810 = vunpack.c.l.s4 1983009808
  %v811 = vunpack.c.0.s8 %v810
  %v812 = vlaneseq
  %v813 = vshrl.u32 %v812, 7
  %v814 = vsub.s32 %v811, %v813
  %v815 = vrot.slane %v801, %v814
  %v816 = vcombine.high %v808, %v808
  %v817 = vcombine.high %v815, %v815
  %v819 = vsel %vm39, %v797, 0
  %v822 = vsel %vm43, %v808, 0
  %v825 = vsel %vm43, %v816, 0
  %v828 = vsel %vm43, %v815, 0
  %v831 = vsel %vm43, %v817, 0
  %833 = vmatprep.subr.bf16.mxu0 0
  %834 = vmatpush1.bf16.msra.mxu0 0
  %835 = vmatprep.subr.bf16.mxu0 0
  %836 = vmatpush1.bf16.msra.mxu0 0
  %837 = vmatprep.subr.bf16.mxu0 0
  %838 = vmatpush1.bf16.msra.mxu0 0
  %839 = vmatprep.subr.bf16.mxu0 0
  %840 = vmatpush1.bf16.msra.mxu0 0
  %841 = vmatprep.subr.bf16.mxu0 0
  %842 = vmatpush1.bf16.msra.mxu0 0
  %843 = vmatprep.subr.bf16.mxu0 0
  %844 = vmatpush1.bf16.msra.mxu0 0
  %845 = vmatprep.subr.bf16.mxu0 0
  %846 = vmatpush1.bf16.msra.mxu0 0
  %847 = vmatprep.subr.bf16.mxu0 %v825
  %848 = vmatpush1.bf16.msra.mxu0 %v822
  %849 = vmatprep.subr.bf16.mxu0 0
  %850 = vmatpush2.bf16.msra.mxu0 0
  %851 = vmatprep.subr.bf16.mxu0 0
  %852 = vmatpush2.bf16.msra.mxu0 0
  %853 = vmatprep.subr.bf16.mxu0 0
  %854 = vmatpush2.bf16.msra.mxu0 0
  %855 = vmatprep.subr.bf16.mxu0 0
  %856 = vmatpush2.bf16.msra.mxu0 0
  %857 = vmatprep.subr.bf16.mxu0 0
  %858 = vmatpush2.bf16.msra.mxu0 0
  %859 = vmatprep.subr.bf16.mxu0 0
  %860 = vmatpush2.bf16.msra.mxu0 0
  %861 = vmatprep.subr.bf16.mxu0 0
  %862 = vmatpush2.bf16.msra.mxu0 0
  %863 = vmatprep.subr.bf16.mxu0 0
  %864 = vmatpush2.bf16.msra.mxu0 0
  %865 = vmatprep.mubr.bf16.mxu0 0
  %866 = vmatmul.mubr.bf16.gmra.mxu0 %v819
  %v867 = vpop.f32.mrf.mxu0
  %v868 = vadd.f32 0.0, %v867
  %v869 = vpop.f32.mrf.mxu0
  %v870 = vadd.f32 0.0, %v869
  %v871 = vpop.f32.mrf.mxu0
  %v872 = vpop.f32.mrf.mxu0
  %873 = vdwg.mxu0
  %874 = vmatprep.subr.bf16.mxu0 0
  %875 = vmatpush1.bf16.msra.mxu0 0
  %876 = vmatprep.subr.bf16.mxu0 0
  %877 = vmatpush1.bf16.msra.mxu0 0
  %878 = vmatprep.subr.bf16.mxu0 0
  %879 = vmatpush1.bf16.msra.mxu0 0
  %880 = vmatprep.subr.bf16.mxu0 0
  %881 = vmatpush1.bf16.msra.mxu0 0
  %882 = vmatprep.subr.bf16.mxu0 0
  %883 = vmatpush1.bf16.msra.mxu0 0
  %884 = vmatprep.subr.bf16.mxu0 0
  %885 = vmatpush1.bf16.msra.mxu0 0
  %886 = vmatprep.subr.bf16.mxu0 0
  %887 = vmatpush1.bf16.msra.mxu0 0
  %888 = vmatprep.subr.bf16.mxu0 %v831
  %889 = vmatpush1.bf16.msra.mxu0 %v828
  %890 = vmatprep.subr.bf16.mxu0 0
  %891 = vmatpush2.bf16.msra.mxu0 0
  %892 = vmatprep.subr.bf16.mxu0 0
  %893 = vmatpush2.bf16.msra.mxu0 0
  %894 = vmatprep.subr.bf16.mxu0 0
  %895 = vmatpush2.bf16.msra.mxu0 0
  %896 = vmatprep.subr.bf16.mxu0 0
  %897 = vmatpush2.bf16.msra.mxu0 0
  %898 = vmatprep.subr.bf16.mxu0 0
  %899 = vmatpush2.bf16.msra.mxu0 0
  %900 = vmatprep.subr.bf16.mxu0 0
  %901 = vmatpush2.bf16.msra.mxu0 0
  %902 = vmatprep.subr.bf16.mxu0 0
  %903 = vmatpush2.bf16.msra.mxu0 0
  %904 = vmatprep.subr.bf16.mxu0 0
  %905 = vmatpush2.bf16.msra.mxu0 0
  %906 = vmatprep.mubr.bf16.mxu0 0
  %907 = vmatmul.mubr.bf16.gmra.mxu0 %v819
  %v908 = vpop.f32.mrf.mxu0
  %v909 = vadd.f32 0.0, %v908
  %v910 = vpop.f32.mrf.mxu0
  %v911 = vadd.f32 0.0, %v910
  %v912 = vpop.f32.mrf.mxu0
  %v913 = vpop.f32.mrf.mxu0
  %914 = vdwg.mxu0
  %v915 = vadd.f32 %v792, %v868
  %v916 = vadd.f32 %v793, %v870
  %v917 = vadd.f32 %v794, %v909
  %v918 = vadd.f32 %v795, %v911
  %s919 = scalar_lea.vmem %s1, 32
  %v920 = vld [vmem:[%s919] sm:$0xf]
  %s921 = scalar_lea.vmem %s1, 36
  %v922 = vld [vmem:[%s921] sm:$0xf]
  %v924 = vsel %vm39, %v922, 0
  %926 = vmatprep.subr.bf16.mxu0 0
  %927 = vmatpush1.bf16.msra.mxu0 0
  %928 = vmatprep.subr.bf16.mxu0 0
  %929 = vmatpush1.bf16.msra.mxu0 0
  %930 = vmatprep.subr.bf16.mxu0 0
  %931 = vmatpush1.bf16.msra.mxu0 0
  %932 = vmatprep.subr.bf16.mxu0 0
  %933 = vmatpush1.bf16.msra.mxu0 0
  %934 = vmatprep.subr.bf16.mxu0 0
  %935 = vmatpush1.bf16.msra.mxu0 0
  %936 = vmatprep.subr.bf16.mxu0 0
  %937 = vmatpush1.bf16.msra.mxu0 0
  %938 = vmatprep.subr.bf16.mxu0 0
  %939 = vmatpush1.bf16.msra.mxu0 0
  %940 = vmatprep.subr.bf16.mxu0 %v405
  %941 = vmatpush1.bf16.msra.mxu0 %v402
  %942 = vmatprep.subr.bf16.mxu0 0
  %943 = vmatpush2.bf16.msra.mxu0 0
  %944 = vmatprep.subr.bf16.mxu0 0
  %945 = vmatpush2.bf16.msra.mxu0 0
  %946 = vmatprep.subr.bf16.mxu0 0
  %947 = vmatpush2.bf16.msra.mxu0 0
  %948 = vmatprep.subr.bf16.mxu0 0
  %949 = vmatpush2.bf16.msra.mxu0 0
  %950 = vmatprep.subr.bf16.mxu0 0
  %951 = vmatpush2.bf16.msra.mxu0 0
  %952 = vmatprep.subr.bf16.mxu0 0
  %953 = vmatpush2.bf16.msra.mxu0 0
  %954 = vmatprep.subr.bf16.mxu0 0
  %955 = vmatpush2.bf16.msra.mxu0 0
  %956 = vmatprep.subr.bf16.mxu0 0
  %957 = vmatpush2.bf16.msra.mxu0 0
  %958 = vmatprep.mubr.bf16.mxu0 0
  %959 = vmatmul.mubr.bf16.gmra.mxu0 %v924
  %v960 = vpop.f32.mrf.mxu0
  %v961 = vadd.f32 0.0, %v960
  %v962 = vpop.f32.mrf.mxu0
  %v963 = vadd.f32 0.0, %v962
  %v964 = vpop.f32.mrf.mxu0
  %v965 = vpop.f32.mrf.mxu0
  %966 = vdwg.mxu0
  %967 = vmatprep.subr.bf16.mxu0 0
  %968 = vmatpush1.bf16.msra.mxu0 0
  %969 = vmatprep.subr.bf16.mxu0 0
  %970 = vmatpush1.bf16.msra.mxu0 0
  %971 = vmatprep.subr.bf16.mxu0 0
  %972 = vmatpush1.bf16.msra.mxu0 0
  %973 = vmatprep.subr.bf16.mxu0 0
  %974 = vmatpush1.bf16.msra.mxu0 0
  %975 = vmatprep.subr.bf16.mxu0 0
  %976 = vmatpush1.bf16.msra.mxu0 0
  %977 = vmatprep.subr.bf16.mxu0 0
  %978 = vmatpush1.bf16.msra.mxu0 0
  %979 = vmatprep.subr.bf16.mxu0 0
  %980 = vmatpush1.bf16.msra.mxu0 0
  %981 = vmatprep.subr.bf16.mxu0 %v411
  %982 = vmatpush1.bf16.msra.mxu0 %v408
  %983 = vmatprep.subr.bf16.mxu0 0
  %984 = vmatpush2.bf16.msra.mxu0 0
  %985 = vmatprep.subr.bf16.mxu0 0
  %986 = vmatpush2.bf16.msra.mxu0 0
  %987 = vmatprep.subr.bf16.mxu0 0
  %988 = vmatpush2.bf16.msra.mxu0 0
  %989 = vmatprep.subr.bf16.mxu0 0
  %990 = vmatpush2.bf16.msra.mxu0 0
  %991 = vmatprep.subr.bf16.mxu0 0
  %992 = vmatpush2.bf16.msra.mxu0 0
  %993 = vmatprep.subr.bf16.mxu0 0
  %994 = vmatpush2.bf16.msra.mxu0 0
  %995 = vmatprep.subr.bf16.mxu0 0
  %996 = vmatpush2.bf16.msra.mxu0 0
  %997 = vmatprep.subr.bf16.mxu0 0
  %998 = vmatpush2.bf16.msra.mxu0 0
  %999 = vmatprep.mubr.bf16.mxu0 0
  %1000 = vmatmul.mubr.bf16.gmra.mxu0 %v924
  %v1001 = vpop.f32.mrf.mxu0
  %v1002 = vadd.f32 0.0, %v1001
  %v1003 = vpop.f32.mrf.mxu0
  %v1004 = vadd.f32 0.0, %v1003
  %v1005 = vpop.f32.mrf.mxu0
  %v1006 = vpop.f32.mrf.mxu0
  %1007 = vdwg.mxu0
  %v1009 = vsel %vm39, %v920, 0
  %1011 = vmatprep.subr.bf16.mxu0 0
  %1012 = vmatpush1.bf16.msra.mxu0 0
  %1013 = vmatprep.subr.bf16.mxu0 0
  %1014 = vmatpush1.bf16.msra.mxu0 0
  %1015 = vmatprep.subr.bf16.mxu0 0
  %1016 = vmatpush1.bf16.msra.mxu0 0
  %1017 = vmatprep.subr.bf16.mxu0 0
  %1018 = vmatpush1.bf16.msra.mxu0 0
  %1019 = vmatprep.subr.bf16.mxu0 0
  %1020 = vmatpush1.bf16.msra.mxu0 0
  %1021 = vmatprep.subr.bf16.mxu0 0
  %1022 = vmatpush1.bf16.msra.mxu0 0
  %1023 = vmatprep.subr.bf16.mxu0 0
  %1024 = vmatpush1.bf16.msra.mxu0 0
  %1025 = vmatprep.subr.bf16.mxu0 %v282
  %1026 = vmatpush1.bf16.msra.mxu0 %v279
  %1027 = vmatprep.subr.bf16.mxu0 0
  %1028 = vmatpush2.bf16.msra.mxu0 0
  %1029 = vmatprep.subr.bf16.mxu0 0
  %1030 = vmatpush2.bf16.msra.mxu0 0
  %1031 = vmatprep.subr.bf16.mxu0 0
  %1032 = vmatpush2.bf16.msra.mxu0 0
  %1033 = vmatprep.subr.bf16.mxu0 0
  %1034 = vmatpush2.bf16.msra.mxu0 0
  %1035 = vmatprep.subr.bf16.mxu0 0
  %1036 = vmatpush2.bf16.msra.mxu0 0
  %1037 = vmatprep.subr.bf16.mxu0 0
  %1038 = vmatpush2.bf16.msra.mxu0 0
  %1039 = vmatprep.subr.bf16.mxu0 0
  %1040 = vmatpush2.bf16.msra.mxu0 0
  %1041 = vmatprep.subr.bf16.mxu0 0
  %1042 = vmatpush2.bf16.msra.mxu0 0
  %1043 = vmatprep.mubr.bf16.mxu0 0
  %1044 = vmatmul.mubr.bf16.gmra.mxu0 %v1009
  %v1045 = vpop.f32.mrf.mxu0
  %v1046 = vadd.f32 %v961, %v1045
  %v1047 = vpop.f32.mrf.mxu0
  %v1048 = vadd.f32 %v963, %v1047
  %v1049 = vpop.f32.mrf.mxu0
  %v1050 = vpop.f32.mrf.mxu0
  %1051 = vdwg.mxu0
  %1052 = vmatprep.subr.bf16.mxu0 0
  %1053 = vmatpush1.bf16.msra.mxu0 0
  %1054 = vmatprep.subr.bf16.mxu0 0
  %1055 = vmatpush1.bf16.msra.mxu0 0
  %1056 = vmatprep.subr.bf16.mxu0 0
  %1057 = vmatpush1.bf16.msra.mxu0 0
  %1058 = vmatprep.subr.bf16.mxu0 0
  %1059 = vmatpush1.bf16.msra.mxu0 0
  %1060 = vmatprep.subr.bf16.mxu0 0
  %1061 = vmatpush1.bf16.msra.mxu0 0
  %1062 = vmatprep.subr.bf16.mxu0 0
  %1063 = vmatpush1.bf16.msra.mxu0 0
  %1064 = vmatprep.subr.bf16.mxu0 0
  %1065 = vmatpush1.bf16.msra.mxu0 0
  %1066 = vmatprep.subr.bf16.mxu0 %v288
  %1067 = vmatpush1.bf16.msra.mxu0 %v285
  %1068 = vmatprep.subr.bf16.mxu0 0
  %1069 = vmatpush2.bf16.msra.mxu0 0
  %1070 = vmatprep.subr.bf16.mxu0 0
  %1071 = vmatpush2.bf16.msra.mxu0 0
  %1072 = vmatprep.subr.bf16.mxu0 0
  %1073 = vmatpush2.bf16.msra.mxu0 0
  %1074 = vmatprep.subr.bf16.mxu0 0
  %1075 = vmatpush2.bf16.msra.mxu0 0
  %1076 = vmatprep.subr.bf16.mxu0 0
  %1077 = vmatpush2.bf16.msra.mxu0 0
  %1078 = vmatprep.subr.bf16.mxu0 0
  %1079 = vmatpush2.bf16.msra.mxu0 0
  %1080 = vmatprep.subr.bf16.mxu0 0
  %1081 = vmatpush2.bf16.msra.mxu0 0
  %1082 = vmatprep.subr.bf16.mxu0 0
  %1083 = vmatpush2.bf16.msra.mxu0 0
  %1084 = vmatprep.mubr.bf16.mxu0 0
  %1085 = vmatmul.mubr.bf16.gmra.mxu0 %v1009
  %v1086 = vpop.f32.mrf.mxu0
  %v1087 = vadd.f32 %v1002, %v1086
  %v1088 = vpop.f32.mrf.mxu0
  %v1089 = vadd.f32 %v1004, %v1088
  %v1090 = vpop.f32.mrf.mxu0
  %v1091 = vpop.f32.mrf.mxu0
  %1092 = vdwg.mxu0
  %s1093 = scalar_lea.vmem %s1, 40
  %v1094 = vld [vmem:[%s1093] sm:$0xf]
  %s1095 = scalar_lea.vmem %s0, 48
  %v1096 = vld [vmem:[%s1095] sm:$0xff]
  %v1098 = vcombine.high %v1096, %v1096
  %v1100 = vunpack.c.l.s4 1983009808
  %v1101 = vunpack.c.0.s8 %v1100
  %v1102 = vlaneseq
  %v1103 = vshrl.u32 %v1102, 7
  %v1104 = vsub.s32 %v1101, %v1103
  %v1105 = vrot.slane %v1096, %v1104
  %v1107 = vunpack.c.l.s4 1983009808
  %v1108 = vunpack.c.0.s8 %v1107
  %v1109 = vlaneseq
  %v1110 = vshrl.u32 %v1109, 7
  %v1111 = vsub.s32 %v1108, %v1110
  %v1112 = vrot.slane %v1098, %v1111
  %v1113 = vcombine.high %v1105, %v1105
  %v1114 = vcombine.high %v1112, %v1112
  %v1116 = vsel %vm39, %v1094, 0
  %v1119 = vsel %vm43, %v1105, 0
  %v1122 = vsel %vm43, %v1113, 0
  %v1125 = vsel %vm43, %v1112, 0
  %v1128 = vsel %vm43, %v1114, 0
  %1130 = vmatprep.subr.bf16.mxu0 0
  %1131 = vmatpush1.bf16.msra.mxu0 0
  %1132 = vmatprep.subr.bf16.mxu0 0
  %1133 = vmatpush1.bf16.msra.mxu0 0
  %1134 = vmatprep.subr.bf16.mxu0 0
  %1135 = vmatpush1.bf16.msra.mxu0 0
  %1136 = vmatprep.subr.bf16.mxu0 0
  %1137 = vmatpush1.bf16.msra.mxu0 0
  %1138 = vmatprep.subr.bf16.mxu0 0
  %1139 = vmatpush1.bf16.msra.mxu0 0
  %1140 = vmatprep.subr.bf16.mxu0 0
  %1141 = vmatpush1.bf16.msra.mxu0 0
  %1142 = vmatprep.subr.bf16.mxu0 0
  %1143 = vmatpush1.bf16.msra.mxu0 0
  %1144 = vmatprep.subr.bf16.mxu0 %v1122
  %1145 = vmatpush1.bf16.msra.mxu0 %v1119
  %1146 = vmatprep.subr.bf16.mxu0 0
  %1147 = vmatpush2.bf16.msra.mxu0 0
  %1148 = vmatprep.subr.bf16.mxu0 0
  %1149 = vmatpush2.bf16.msra.mxu0 0
  %1150 = vmatprep.subr.bf16.mxu0 0
  %1151 = vmatpush2.bf16.msra.mxu0 0
  %1152 = vmatprep.subr.bf16.mxu0 0
  %1153 = vmatpush2.bf16.msra.mxu0 0
  %1154 = vmatprep.subr.bf16.mxu0 0
  %1155 = vmatpush2.bf16.msra.mxu0 0
  %1156 = vmatprep.subr.bf16.mxu0 0
  %1157 = vmatpush2.bf16.msra.mxu0 0
  %1158 = vmatprep.subr.bf16.mxu0 0
  %1159 = vmatpush2.bf16.msra.mxu0 0
  %1160 = vmatprep.subr.bf16.mxu0 0
  %1161 = vmatpush2.bf16.msra.mxu0 0
  %1162 = vmatprep.mubr.bf16.mxu0 0
  %1163 = vmatmul.mubr.bf16.gmra.mxu0 %v1116
  %v1164 = vpop.f32.mrf.mxu0
  %v1165 = vadd.f32 0.0, %v1164
  %v1166 = vpop.f32.mrf.mxu0
  %v1167 = vadd.f32 0.0, %v1166
  %v1168 = vpop.f32.mrf.mxu0
  %v1169 = vpop.f32.mrf.mxu0
  %1170 = vdwg.mxu0
  %1171 = vmatprep.subr.bf16.mxu0 0
  %1172 = vmatpush1.bf16.msra.mxu0 0
  %1173 = vmatprep.subr.bf16.mxu0 0
  %1174 = vmatpush1.bf16.msra.mxu0 0
  %1175 = vmatprep.subr.bf16.mxu0 0
  %1176 = vmatpush1.bf16.msra.mxu0 0
  %1177 = vmatprep.subr.bf16.mxu0 0
  %1178 = vmatpush1.bf16.msra.mxu0 0
  %1179 = vmatprep.subr.bf16.mxu0 0
  %1180 = vmatpush1.bf16.msra.mxu0 0
  %1181 = vmatprep.subr.bf16.mxu0 0
  %1182 = vmatpush1.bf16.msra.mxu0 0
  %1183 = vmatprep.subr.bf16.mxu0 0
  %1184 = vmatpush1.bf16.msra.mxu0 0
  %1185 = vmatprep.subr.bf16.mxu0 %v1128
  %1186 = vmatpush1.bf16.msra.mxu0 %v1125
  %1187 = vmatprep.subr.bf16.mxu0 0
  %1188 = vmatpush2.bf16.msra.mxu0 0
  %1189 = vmatprep.subr.bf16.mxu0 0
  %1190 = vmatpush2.bf16.msra.mxu0 0
  %1191 = vmatprep.subr.bf16.mxu0 0
  %1192 = vmatpush2.bf16.msra.mxu0 0
  %1193 = vmatprep.subr.bf16.mxu0 0
  %1194 = vmatpush2.bf16.msra.mxu0 0
  %1195 = vmatprep.subr.bf16.mxu0 0
  %1196 = vmatpush2.bf16.msra.mxu0 0
  %1197 = vmatprep.subr.bf16.mxu0 0
  %1198 = vmatpush2.bf16.msra.mxu0 0
  %1199 = vmatprep.subr.bf16.mxu0 0
  %1200 = vmatpush2.bf16.msra.mxu0 0
  %1201 = vmatprep.subr.bf16.mxu0 0
  %1202 = vmatpush2.bf16.msra.mxu0 0
  %1203 = vmatprep.mubr.bf16.mxu0 0
  %1204 = vmatmul.mubr.bf16.gmra.mxu0 %v1116
  %v1205 = vpop.f32.mrf.mxu0
  %v1206 = vadd.f32 0.0, %v1205
  %v1207 = vpop.f32.mrf.mxu0
  %v1208 = vadd.f32 0.0, %v1207
  %v1209 = vpop.f32.mrf.mxu0
  %v1210 = vpop.f32.mrf.mxu0
  %1211 = vdwg.mxu0
  %v1212 = vadd.f32 %v1046, %v1165
  %v1213 = vadd.f32 %v1048, %v1167
  %v1214 = vadd.f32 %v1087, %v1206
  %v1215 = vadd.f32 %v1089, %v1208
  %s1216 = scalar_lea.vmem %s1, 44
  %v1217 = vld [vmem:[%s1216] sm:$0xf]
  %s1218 = scalar_lea.vmem %s0, 56
  %v1219 = vld [vmem:[%s1218] sm:$0xff]
  %v1221 = vcombine.high %v1219, %v1219
  %v1223 = vunpack.c.l.s4 1983009808
  %v1224 = vunpack.c.0.s8 %v1223
  %v1225 = vlaneseq
  %v1226 = vshrl.u32 %v1225, 7
  %v1227 = vsub.s32 %v1224, %v1226
  %v1228 = vrot.slane %v1219, %v1227
  %v1230 = vunpack.c.l.s4 1983009808
  %v1231 = vunpack.c.0.s8 %v1230
  %v1232 = vlaneseq
  %v1233 = vshrl.u32 %v1232, 7
  %v1234 = vsub.s32 %v1231, %v1233
  %v1235 = vrot.slane %v1221, %v1234
  %v1236 = vcombine.high %v1228, %v1228
  %v1237 = vcombine.high %v1235, %v1235
  %v1239 = vsel %vm39, %v1217, 0
  %v1242 = vsel %vm43, %v1228, 0
  %v1245 = vsel %vm43, %v1236, 0
  %v1248 = vsel %vm43, %v1235, 0
  %v1251 = vsel %vm43, %v1237, 0
  %1253 = vmatprep.subr.bf16.mxu0 0
  %1254 = vmatpush1.bf16.msra.mxu0 0
  %1255 = vmatprep.subr.bf16.mxu0 0
  %1256 = vmatpush1.bf16.msra.mxu0 0
  %1257 = vmatprep.subr.bf16.mxu0 0
  %1258 = vmatpush1.bf16.msra.mxu0 0
  %1259 = vmatprep.subr.bf16.mxu0 0
  %1260 = vmatpush1.bf16.msra.mxu0 0
  %1261 = vmatprep.subr.bf16.mxu0 0
  %1262 = vmatpush1.bf16.msra.mxu0 0
  %1263 = vmatprep.subr.bf16.mxu0 0
  %1264 = vmatpush1.bf16.msra.mxu0 0
  %1265 = vmatprep.subr.bf16.mxu0 0
  %1266 = vmatpush1.bf16.msra.mxu0 0
  %1267 = vmatprep.subr.bf16.mxu0 %v1245
  %1268 = vmatpush1.bf16.msra.mxu0 %v1242
  %1269 = vmatprep.subr.bf16.mxu0 0
  %1270 = vmatpush2.bf16.msra.mxu0 0
  %1271 = vmatprep.subr.bf16.mxu0 0
  %1272 = vmatpush2.bf16.msra.mxu0 0
  %1273 = vmatprep.subr.bf16.mxu0 0
  %1274 = vmatpush2.bf16.msra.mxu0 0
  %1275 = vmatprep.subr.bf16.mxu0 0
  %1276 = vmatpush2.bf16.msra.mxu0 0
  %1277 = vmatprep.subr.bf16.mxu0 0
  %1278 = vmatpush2.bf16.msra.mxu0 0
  %1279 = vmatprep.subr.bf16.mxu0 0
  %1280 = vmatpush2.bf16.msra.mxu0 0
  %1281 = vmatprep.subr.bf16.mxu0 0
  %1282 = vmatpush2.bf16.msra.mxu0 0
  %1283 = vmatprep.subr.bf16.mxu0 0
  %1284 = vmatpush2.bf16.msra.mxu0 0
  %1285 = vmatprep.mubr.bf16.mxu0 0
  %1286 = vmatmul.mubr.bf16.gmra.mxu0 %v1239
  %v1287 = vpop.f32.mrf.mxu0
  %v1288 = vadd.f32 0.0, %v1287
  %v1289 = vpop.f32.mrf.mxu0
  %v1290 = vadd.f32 0.0, %v1289
  %v1291 = vpop.f32.mrf.mxu0
  %v1292 = vpop.f32.mrf.mxu0
  %1293 = vdwg.mxu0
  %1294 = vmatprep.subr.bf16.mxu0 0
  %1295 = vmatpush1.bf16.msra.mxu0 0
  %1296 = vmatprep.subr.bf16.mxu0 0
  %1297 = vmatpush1.bf16.msra.mxu0 0
  %1298 = vmatprep.subr.bf16.mxu0 0
  %1299 = vmatpush1.bf16.msra.mxu0 0
  %1300 = vmatprep.subr.bf16.mxu0 0
  %1301 = vmatpush1.bf16.msra.mxu0 0
  %1302 = vmatprep.subr.bf16.mxu0 0
  %1303 = vmatpush1.bf16.msra.mxu0 0
  %1304 = vmatprep.subr.bf16.mxu0 0
  %1305 = vmatpush1.bf16.msra.mxu0 0
  %1306 = vmatprep.subr.bf16.mxu0 0
  %1307 = vmatpush1.bf16.msra.mxu0 0
  %1308 = vmatprep.subr.bf16.mxu0 %v1251
  %1309 = vmatpush1.bf16.msra.mxu0 %v1248
  %1310 = vmatprep.subr.bf16.mxu0 0
  %1311 = vmatpush2.bf16.msra.mxu0 0
  %1312 = vmatprep.subr.bf16.mxu0 0
  %1313 = vmatpush2.bf16.msra.mxu0 0
  %1314 = vmatprep.subr.bf16.mxu0 0
  %1315 = vmatpush2.bf16.msra.mxu0 0
  %1316 = vmatprep.subr.bf16.mxu0 0
  %1317 = vmatpush2.bf16.msra.mxu0 0
  %1318 = vmatprep.subr.bf16.mxu0 0
  %1319 = vmatpush2.bf16.msra.mxu0 0
  %1320 = vmatprep.subr.bf16.mxu0 0
  %1321 = vmatpush2.bf16.msra.mxu0 0
  %1322 = vmatprep.subr.bf16.mxu0 0
  %1323 = vmatpush2.bf16.msra.mxu0 0
  %1324 = vmatprep.subr.bf16.mxu0 0
  %1325 = vmatpush2.bf16.msra.mxu0 0
  %1326 = vmatprep.mubr.bf16.mxu0 0
  %1327 = vmatmul.mubr.bf16.gmra.mxu0 %v1239
  %v1328 = vpop.f32.mrf.mxu0
  %v1329 = vadd.f32 0.0, %v1328
  %v1330 = vpop.f32.mrf.mxu0
  %v1331 = vadd.f32 0.0, %v1330
  %v1332 = vpop.f32.mrf.mxu0
  %v1333 = vpop.f32.mrf.mxu0
  %1334 = vdwg.mxu0
  %v1335 = vadd.f32 %v1212, %v1288
  %v1336 = vadd.f32 %v1213, %v1290
  %v1337 = vadd.f32 %v1214, %v1329
  %v1338 = vadd.f32 %v1215, %v1331
  %s1339 = scalar_lea.vmem %s1, 48
  %v1340 = vld [vmem:[%s1339] sm:$0xf]
  %s1341 = scalar_lea.vmem %s1, 52
  %v1342 = vld [vmem:[%s1341] sm:$0xf]
  %v1344 = vsel %vm39, %v1342, 0
  %1346 = vmatprep.subr.bf16.mxu0 0
  %1347 = vmatpush1.bf16.msra.mxu0 0
  %1348 = vmatprep.subr.bf16.mxu0 0
  %1349 = vmatpush1.bf16.msra.mxu0 0
  %1350 = vmatprep.subr.bf16.mxu0 0
  %1351 = vmatpush1.bf16.msra.mxu0 0
  %1352 = vmatprep.subr.bf16.mxu0 0
  %1353 = vmatpush1.bf16.msra.mxu0 0
  %1354 = vmatprep.subr.bf16.mxu0 0
  %1355 = vmatpush1.bf16.msra.mxu0 0
  %1356 = vmatprep.subr.bf16.mxu0 0
  %1357 = vmatpush1.bf16.msra.mxu0 0
  %1358 = vmatprep.subr.bf16.mxu0 0
  %1359 = vmatpush1.bf16.msra.mxu0 0
  %1360 = vmatprep.subr.bf16.mxu0 %v825
  %1361 = vmatpush1.bf16.msra.mxu0 %v822
  %1362 = vmatprep.subr.bf16.mxu0 0
  %1363 = vmatpush2.bf16.msra.mxu0 0
  %1364 = vmatprep.subr.bf16.mxu0 0
  %1365 = vmatpush2.bf16.msra.mxu0 0
  %1366 = vmatprep.subr.bf16.mxu0 0
  %1367 = vmatpush2.bf16.msra.mxu0 0
  %1368 = vmatprep.subr.bf16.mxu0 0
  %1369 = vmatpush2.bf16.msra.mxu0 0
  %1370 = vmatprep.subr.bf16.mxu0 0
  %1371 = vmatpush2.bf16.msra.mxu0 0
  %1372 = vmatprep.subr.bf16.mxu0 0
  %1373 = vmatpush2.bf16.msra.mxu0 0
  %1374 = vmatprep.subr.bf16.mxu0 0
  %1375 = vmatpush2.bf16.msra.mxu0 0
  %1376 = vmatprep.subr.bf16.mxu0 0
  %1377 = vmatpush2.bf16.msra.mxu0 0
  %1378 = vmatprep.mubr.bf16.mxu0 0
  %1379 = vmatmul.mubr.bf16.gmra.mxu0 %v1344
  %v1380 = vpop.f32.mrf.mxu0
  %v1381 = vadd.f32 0.0, %v1380
  %v1382 = vpop.f32.mrf.mxu0
  %v1383 = vadd.f32 0.0, %v1382
  %v1384 = vpop.f32.mrf.mxu0
  %v1385 = vpop.f32.mrf.mxu0
  %1386 = vdwg.mxu0
  %1387 = vmatprep.subr.bf16.mxu0 0
  %1388 = vmatpush1.bf16.msra.mxu0 0
  %1389 = vmatprep.subr.bf16.mxu0 0
  %1390 = vmatpush1.bf16.msra.mxu0 0
  %1391 = vmatprep.subr.bf16.mxu0 0
  %1392 = vmatpush1.bf16.msra.mxu0 0
  %1393 = vmatprep.subr.bf16.mxu0 0
  %1394 = vmatpush1.bf16.msra.mxu0 0
  %1395 = vmatprep.subr.bf16.mxu0 0
  %1396 = vmatpush1.bf16.msra.mxu0 0
  %1397 = vmatprep.subr.bf16.mxu0 0
  %1398 = vmatpush1.bf16.msra.mxu0 0
  %1399 = vmatprep.subr.bf16.mxu0 0
  %1400 = vmatpush1.bf16.msra.mxu0 0
  %1401 = vmatprep.subr.bf16.mxu0 %v831
  %1402 = vmatpush1.bf16.msra.mxu0 %v828
  %1403 = vmatprep.subr.bf16.mxu0 0
  %1404 = vmatpush2.bf16.msra.mxu0 0
  %1405 = vmatprep.subr.bf16.mxu0 0
  %1406 = vmatpush2.bf16.msra.mxu0 0
  %1407 = vmatprep.subr.bf16.mxu0 0
  %1408 = vmatpush2.bf16.msra.mxu0 0
  %1409 = vmatprep.subr.bf16.mxu0 0
  %1410 = vmatpush2.bf16.msra.mxu0 0
  %1411 = vmatprep.subr.bf16.mxu0 0
  %1412 = vmatpush2.bf16.msra.mxu0 0
  %1413 = vmatprep.subr.bf16.mxu0 0
  %1414 = vmatpush2.bf16.msra.mxu0 0
  %1415 = vmatprep.subr.bf16.mxu0 0
  %1416 = vmatpush2.bf16.msra.mxu0 0
  %1417 = vmatprep.subr.bf16.mxu0 0
  %1418 = vmatpush2.bf16.msra.mxu0 0
  %1419 = vmatprep.mubr.bf16.mxu0 0
  %1420 = vmatmul.mubr.bf16.gmra.mxu0 %v1344
  %v1421 = vpop.f32.mrf.mxu0
  %v1422 = vadd.f32 0.0, %v1421
  %v1423 = vpop.f32.mrf.mxu0
  %v1424 = vadd.f32 0.0, %v1423
  %v1425 = vpop.f32.mrf.mxu0
  %v1426 = vpop.f32.mrf.mxu0
  %1427 = vdwg.mxu0
  %v1429 = vsel %vm39, %v1340, 0
  %1431 = vmatprep.subr.bf16.mxu0 0
  %1432 = vmatpush1.bf16.msra.mxu0 0
  %1433 = vmatprep.subr.bf16.mxu0 0
  %1434 = vmatpush1.bf16.msra.mxu0 0
  %1435 = vmatprep.subr.bf16.mxu0 0
  %1436 = vmatpush1.bf16.msra.mxu0 0
  %1437 = vmatprep.subr.bf16.mxu0 0
  %1438 = vmatpush1.bf16.msra.mxu0 0
  %1439 = vmatprep.subr.bf16.mxu0 0
  %1440 = vmatpush1.bf16.msra.mxu0 0
  %1441 = vmatprep.subr.bf16.mxu0 0
  %1442 = vmatpush1.bf16.msra.mxu0 0
  %1443 = vmatprep.subr.bf16.mxu0 0
  %1444 = vmatpush1.bf16.msra.mxu0 0
  %1445 = vmatprep.subr.bf16.mxu0 %v405
  %1446 = vmatpush1.bf16.msra.mxu0 %v402
  %1447 = vmatprep.subr.bf16.mxu0 0
  %1448 = vmatpush2.bf16.msra.mxu0 0
  %1449 = vmatprep.subr.bf16.mxu0 0
  %1450 = vmatpush2.bf16.msra.mxu0 0
  %1451 = vmatprep.subr.bf16.mxu0 0
  %1452 = vmatpush2.bf16.msra.mxu0 0
  %1453 = vmatprep.subr.bf16.mxu0 0
  %1454 = vmatpush2.bf16.msra.mxu0 0
  %1455 = vmatprep.subr.bf16.mxu0 0
  %1456 = vmatpush2.bf16.msra.mxu0 0
  %1457 = vmatprep.subr.bf16.mxu0 0
  %1458 = vmatpush2.bf16.msra.mxu0 0
  %1459 = vmatprep.subr.bf16.mxu0 0
  %1460 = vmatpush2.bf16.msra.mxu0 0
  %1461 = vmatprep.subr.bf16.mxu0 0
  %1462 = vmatpush2.bf16.msra.mxu0 0
  %1463 = vmatprep.mubr.bf16.mxu0 0
  %1464 = vmatmul.mubr.bf16.gmra.mxu0 %v1429
  %v1465 = vpop.f32.mrf.mxu0
  %v1466 = vadd.f32 %v1381, %v1465
  %v1467 = vpop.f32.mrf.mxu0
  %v1468 = vadd.f32 %v1383, %v1467
  %v1469 = vpop.f32.mrf.mxu0
  %v1470 = vpop.f32.mrf.mxu0
  %1471 = vdwg.mxu0
  %1472 = vmatprep.subr.bf16.mxu0 0
  %1473 = vmatpush1.bf16.msra.mxu0 0
  %1474 = vmatprep.subr.bf16.mxu0 0
  %1475 = vmatpush1.bf16.msra.mxu0 0
  %1476 = vmatprep.subr.bf16.mxu0 0
  %1477 = vmatpush1.bf16.msra.mxu0 0
  %1478 = vmatprep.subr.bf16.mxu0 0
  %1479 = vmatpush1.bf16.msra.mxu0 0
  %1480 = vmatprep.subr.bf16.mxu0 0
  %1481 = vmatpush1.bf16.msra.mxu0 0
  %1482 = vmatprep.subr.bf16.mxu0 0
  %1483 = vmatpush1.bf16.msra.mxu0 0
  %1484 = vmatprep.subr.bf16.mxu0 0
  %1485 = vmatpush1.bf16.msra.mxu0 0
  %1486 = vmatprep.subr.bf16.mxu0 %v411
  %1487 = vmatpush1.bf16.msra.mxu0 %v408
  %1488 = vmatprep.subr.bf16.mxu0 0
  %1489 = vmatpush2.bf16.msra.mxu0 0
  %1490 = vmatprep.subr.bf16.mxu0 0
  %1491 = vmatpush2.bf16.msra.mxu0 0
  %1492 = vmatprep.subr.bf16.mxu0 0
  %1493 = vmatpush2.bf16.msra.mxu0 0
  %1494 = vmatprep.subr.bf16.mxu0 0
  %1495 = vmatpush2.bf16.msra.mxu0 0
  %1496 = vmatprep.subr.bf16.mxu0 0
  %1497 = vmatpush2.bf16.msra.mxu0 0
  %1498 = vmatprep.subr.bf16.mxu0 0
  %1499 = vmatpush2.bf16.msra.mxu0 0
  %1500 = vmatprep.subr.bf16.mxu0 0
  %1501 = vmatpush2.bf16.msra.mxu0 0
  %1502 = vmatprep.subr.bf16.mxu0 0
  %1503 = vmatpush2.bf16.msra.mxu0 0
  %1504 = vmatprep.mubr.bf16.mxu0 0
  %1505 = vmatmul.mubr.bf16.gmra.mxu0 %v1429
  %v1506 = vpop.f32.mrf.mxu0
  %v1507 = vadd.f32 %v1422, %v1506
  %v1508 = vpop.f32.mrf.mxu0
  %v1509 = vadd.f32 %v1424, %v1508
  %v1510 = vpop.f32.mrf.mxu0
  %v1511 = vpop.f32.mrf.mxu0
  %1512 = vdwg.mxu0
  %s1513 = scalar_lea.vmem %s1, 56
  %v1514 = vld [vmem:[%s1513] sm:$0xf]
  %v1516 = vsel %vm39, %v1514, 0
  %1518 = vmatprep.subr.bf16.mxu0 0
  %1519 = vmatpush1.bf16.msra.mxu0 0
  %1520 = vmatprep.subr.bf16.mxu0 0
  %1521 = vmatpush1.bf16.msra.mxu0 0
  %1522 = vmatprep.subr.bf16.mxu0 0
  %1523 = vmatpush1.bf16.msra.mxu0 0
  %1524 = vmatprep.subr.bf16.mxu0 0
  %1525 = vmatpush1.bf16.msra.mxu0 0
  %1526 = vmatprep.subr.bf16.mxu0 0
  %1527 = vmatpush1.bf16.msra.mxu0 0
  %1528 = vmatprep.subr.bf16.mxu0 0
  %1529 = vmatpush1.bf16.msra.mxu0 0
  %1530 = vmatprep.subr.bf16.mxu0 0
  %1531 = vmatpush1.bf16.msra.mxu0 0
  %1532 = vmatprep.subr.bf16.mxu0 %v1245
  %1533 = vmatpush1.bf16.msra.mxu0 %v1242
  %1534 = vmatprep.subr.bf16.mxu0 0
  %1535 = vmatpush2.bf16.msra.mxu0 0
  %1536 = vmatprep.subr.bf16.mxu0 0
  %1537 = vmatpush2.bf16.msra.mxu0 0
  %1538 = vmatprep.subr.bf16.mxu0 0
  %1539 = vmatpush2.bf16.msra.mxu0 0
  %1540 = vmatprep.subr.bf16.mxu0 0
  %1541 = vmatpush2.bf16.msra.mxu0 0
  %1542 = vmatprep.subr.bf16.mxu0 0
  %1543 = vmatpush2.bf16.msra.mxu0 0
  %1544 = vmatprep.subr.bf16.mxu0 0
  %1545 = vmatpush2.bf16.msra.mxu0 0
  %1546 = vmatprep.subr.bf16.mxu0 0
  %1547 = vmatpush2.bf16.msra.mxu0 0
  %1548 = vmatprep.subr.bf16.mxu0 0
  %1549 = vmatpush2.bf16.msra.mxu0 0
  %1550 = vmatprep.mubr.bf16.mxu0 0
  %1551 = vmatmul.mubr.bf16.gmra.mxu0 %v1516
  %v1552 = vpop.f32.mrf.mxu0
  %v1553 = vadd.f32 0.0, %v1552
  %v1554 = vpop.f32.mrf.mxu0
  %v1555 = vadd.f32 0.0, %v1554
  %v1556 = vpop.f32.mrf.mxu0
  %v1557 = vpop.f32.mrf.mxu0
  %1558 = vdwg.mxu0
  %1559 = vmatprep.subr.bf16.mxu0 0
  %1560 = vmatpush1.bf16.msra.mxu0 0
  %1561 = vmatprep.subr.bf16.mxu0 0
  %1562 = vmatpush1.bf16.msra.mxu0 0
  %1563 = vmatprep.subr.bf16.mxu0 0
  %1564 = vmatpush1.bf16.msra.mxu0 0
  %1565 = vmatprep.subr.bf16.mxu0 0
  %1566 = vmatpush1.bf16.msra.mxu0 0
  %1567 = vmatprep.subr.bf16.mxu0 0
  %1568 = vmatpush1.bf16.msra.mxu0 0
  %1569 = vmatprep.subr.bf16.mxu0 0
  %1570 = vmatpush1.bf16.msra.mxu0 0
  %1571 = vmatprep.subr.bf16.mxu0 0
  %1572 = vmatpush1.bf16.msra.mxu0 0
  %1573 = vmatprep.subr.bf16.mxu0 %v1251
  %1574 = vmatpush1.bf16.msra.mxu0 %v1248
  %1575 = vmatprep.subr.bf16.mxu0 0
  %1576 = vmatpush2.bf16.msra.mxu0 0
  %1577 = vmatprep.subr.bf16.mxu0 0
  %1578 = vmatpush2.bf16.msra.mxu0 0
  %1579 = vmatprep.subr.bf16.mxu0 0
  %1580 = vmatpush2.bf16.msra.mxu0 0
  %1581 = vmatprep.subr.bf16.mxu0 0
  %1582 = vmatpush2.bf16.msra.mxu0 0
  %1583 = vmatprep.subr.bf16.mxu0 0
  %1584 = vmatpush2.bf16.msra.mxu0 0
  %1585 = vmatprep.subr.bf16.mxu0 0
  %1586 = vmatpush2.bf16.msra.mxu0 0
  %1587 = vmatprep.subr.bf16.mxu0 0
  %1588 = vmatpush2.bf16.msra.mxu0 0
  %1589 = vmatprep.subr.bf16.mxu0 0
  %1590 = vmatpush2.bf16.msra.mxu0 0
  %1591 = vmatprep.mubr.bf16.mxu0 0
  %1592 = vmatmul.mubr.bf16.gmra.mxu0 %v1516
  %v1593 = vpop.f32.mrf.mxu0
  %v1594 = vadd.f32 0.0, %v1593
  %v1595 = vpop.f32.mrf.mxu0
  %v1596 = vadd.f32 0.0, %v1595
  %v1597 = vpop.f32.mrf.mxu0
  %v1598 = vpop.f32.mrf.mxu0
  %1599 = vdwg.mxu0
  %v1600 = vadd.f32 %v1466, %v1553
  %v1601 = vadd.f32 %v1468, %v1555
  %v1602 = vadd.f32 %v1507, %v1594
  %v1603 = vadd.f32 %v1509, %v1596
  %s1604 = scalar_lea.vmem %s1, 60
  %v1605 = vld [vmem:[%s1604] sm:$0xf]
  %s1606 = scalar_lea.vmem %s0, 64
  %v1607 = vld [vmem:[%s1606] sm:$0xff]
  %v1609 = vcombine.high %v1607, %v1607
  %v1611 = vunpack.c.l.s4 1983009808
  %v1612 = vunpack.c.0.s8 %v1611
  %v1613 = vlaneseq
  %v1614 = vshrl.u32 %v1613, 7
  %v1615 = vsub.s32 %v1612, %v1614
  %v1616 = vrot.slane %v1607, %v1615
  %v1618 = vunpack.c.l.s4 1983009808
  %v1619 = vunpack.c.0.s8 %v1618
  %v1620 = vlaneseq
  %v1621 = vshrl.u32 %v1620, 7
  %v1622 = vsub.s32 %v1619, %v1621
  %v1623 = vrot.slane %v1609, %v1622
  %v1624 = vcombine.high %v1616, %v1616
  %v1625 = vcombine.high %v1623, %v1623
  %v1627 = vsel %vm39, %v1605, 0
  %v1630 = vsel %vm43, %v1616, 0
  %v1633 = vsel %vm43, %v1624, 0
  %v1636 = vsel %vm43, %v1623, 0
  %v1639 = vsel %vm43, %v1625, 0
  %1641 = vmatprep.subr.bf16.mxu0 0
  %1642 = vmatpush1.bf16.msra.mxu0 0
  %1643 = vmatprep.subr.bf16.mxu0 0
  %1644 = vmatpush1.bf16.msra.mxu0 0
  %1645 = vmatprep.subr.bf16.mxu0 0
  %1646 = vmatpush1.bf16.msra.mxu0 0
  %1647 = vmatprep.subr.bf16.mxu0 0
  %1648 = vmatpush1.bf16.msra.mxu0 0
  %1649 = vmatprep.subr.bf16.mxu0 0
  %1650 = vmatpush1.bf16.msra.mxu0 0
  %1651 = vmatprep.subr.bf16.mxu0 0
  %1652 = vmatpush1.bf16.msra.mxu0 0
  %1653 = vmatprep.subr.bf16.mxu0 0
  %1654 = vmatpush1.bf16.msra.mxu0 0
  %1655 = vmatprep.subr.bf16.mxu0 %v1633
  %1656 = vmatpush1.bf16.msra.mxu0 %v1630
  %1657 = vmatprep.subr.bf16.mxu0 0
  %1658 = vmatpush2.bf16.msra.mxu0 0
  %1659 = vmatprep.subr.bf16.mxu0 0
  %1660 = vmatpush2.bf16.msra.mxu0 0
  %1661 = vmatprep.subr.bf16.mxu0 0
  %1662 = vmatpush2.bf16.msra.mxu0 0
  %1663 = vmatprep.subr.bf16.mxu0 0
  %1664 = vmatpush2.bf16.msra.mxu0 0
  %1665 = vmatprep.subr.bf16.mxu0 0
  %1666 = vmatpush2.bf16.msra.mxu0 0
  %1667 = vmatprep.subr.bf16.mxu0 0
  %1668 = vmatpush2.bf16.msra.mxu0 0
  %1669 = vmatprep.subr.bf16.mxu0 0
  %1670 = vmatpush2.bf16.msra.mxu0 0
  %1671 = vmatprep.subr.bf16.mxu0 0
  %1672 = vmatpush2.bf16.msra.mxu0 0
  %1673 = vmatprep.mubr.bf16.mxu0 0
  %1674 = vmatmul.mubr.bf16.gmra.mxu0 %v1627
  %v1675 = vpop.f32.mrf.mxu0
  %v1676 = vadd.f32 0.0, %v1675
  %v1677 = vpop.f32.mrf.mxu0
  %v1678 = vadd.f32 0.0, %v1677
  %v1679 = vpop.f32.mrf.mxu0
  %v1680 = vpop.f32.mrf.mxu0
  %1681 = vdwg.mxu0
  %1682 = vmatprep.subr.bf16.mxu0 0
  %1683 = vmatpush1.bf16.msra.mxu0 0
  %1684 = vmatprep.subr.bf16.mxu0 0
  %1685 = vmatpush1.bf16.msra.mxu0 0
  %1686 = vmatprep.subr.bf16.mxu0 0
  %1687 = vmatpush1.bf16.msra.mxu0 0
  %1688 = vmatprep.subr.bf16.mxu0 0
  %1689 = vmatpush1.bf16.msra.mxu0 0
  %1690 = vmatprep.subr.bf16.mxu0 0
  %1691 = vmatpush1.bf16.msra.mxu0 0
  %1692 = vmatprep.subr.bf16.mxu0 0
  %1693 = vmatpush1.bf16.msra.mxu0 0
  %1694 = vmatprep.subr.bf16.mxu0 0
  %1695 = vmatpush1.bf16.msra.mxu0 0
  %1696 = vmatprep.subr.bf16.mxu0 %v1639
  %1697 = vmatpush1.bf16.msra.mxu0 %v1636
  %1698 = vmatprep.subr.bf16.mxu0 0
  %1699 = vmatpush2.bf16.msra.mxu0 0
  %1700 = vmatprep.subr.bf16.mxu0 0
  %1701 = vmatpush2.bf16.msra.mxu0 0
  %1702 = vmatprep.subr.bf16.mxu0 0
  %1703 = vmatpush2.bf16.msra.mxu0 0
  %1704 = vmatprep.subr.bf16.mxu0 0
  %1705 = vmatpush2.bf16.msra.mxu0 0
  %1706 = vmatprep.subr.bf16.mxu0 0
  %1707 = vmatpush2.bf16.msra.mxu0 0
  %1708 = vmatprep.subr.bf16.mxu0 0
  %1709 = vmatpush2.bf16.msra.mxu0 0
  %1710 = vmatprep.subr.bf16.mxu0 0
  %1711 = vmatpush2.bf16.msra.mxu0 0
  %1712 = vmatprep.subr.bf16.mxu0 0
  %1713 = vmatpush2.bf16.msra.mxu0 0
  %1714 = vmatprep.mubr.bf16.mxu0 0
  %1715 = vmatmul.mubr.bf16.gmra.mxu0 %v1627
  %v1716 = vpop.f32.mrf.mxu0
  %v1717 = vadd.f32 0.0, %v1716
  %v1718 = vpop.f32.mrf.mxu0
  %v1719 = vadd.f32 0.0, %v1718
  %v1720 = vpop.f32.mrf.mxu0
  %v1721 = vpop.f32.mrf.mxu0
  %1722 = vdwg.mxu0
  %v1723 = vadd.f32 %v1600, %v1676
  %v1724 = vadd.f32 %v1601, %v1678
  %v1725 = vadd.f32 %v1602, %v1717
  %v1726 = vadd.f32 %v1603, %v1719
  %v1727 = vadd.f32 %v495, %v496
  %v1728 = vadd.f32 %v1727, %v497
  %v1729 = vadd.f32 %v1728, %v498
  %v1730 = vadd.f32 %v1729, %v915
  %v1731 = vadd.f32 %v1730, %v916
  %v1732 = vadd.f32 %v1731, %v917
  %v1733 = vadd.f32 %v1732, %v918
  %v1734 = vadd.f32 %v1733, %v1335
  %v1735 = vadd.f32 %v1734, %v1336
  %v1736 = vadd.f32 %v1735, %v1337
  %v1737 = vadd.f32 %v1736, %v1338
  %v1738 = vadd.f32 %v1737, %v1723
  %v1739 = vadd.f32 %v1738, %v1724
  %v1740 = vadd.f32 %v1739, %v1725
  %v1741 = vadd.f32 %v1740, %v1726
  %1742 = vadd.xlane.f32.xlu0 %v1741
  %v1743 = vpop.xlane.xlu0 %1742
  %v1744 = vmul.f32 %v495, %v495
  %v1745 = vmul.f32 %v496, %v496
  %v1746 = vmul.f32 %v497, %v497
  %v1747 = vmul.f32 %v498, %v498
  %v1748 = vmul.f32 %v915, %v915
  %v1749 = vmul.f32 %v916, %v916
  %v1750 = vmul.f32 %v917, %v917
  %v1751 = vmul.f32 %v918, %v918
  %v1752 = vmul.f32 %v1335, %v1335
  %v1753 = vmul.f32 %v1336, %v1336
  %v1754 = vmul.f32 %v1337, %v1337
  %v1755 = vmul.f32 %v1338, %v1338
  %v1756 = vmul.f32 %v1723, %v1723
  %v1757 = vmul.f32 %v1724, %v1724
  %v1758 = vmul.f32 %v1725, %v1725
  %v1759 = vmul.f32 %v1726, %v1726
  %v1760 = vadd.f32 %v1744, %v1745
  %v1761 = vadd.f32 %v1760, %v1746
  %v1762 = vadd.f32 %v1761, %v1747
  %v1763 = vadd.f32 %v1762, %v1748
  %v1764 = vadd.f32 %v1763, %v1749
  %v1765 = vadd.f32 %v1764, %v1750
  %v1766 = vadd.f32 %v1765, %v1751
  %v1767 = vadd.f32 %v1766, %v1752
  %v1768 = vadd.f32 %v1767, %v1753
  %v1769 = vadd.f32 %v1768, %v1754
  %v1770 = vadd.f32 %v1769, %v1755
  %v1771 = vadd.f32 %v1770, %v1756
  %v1772 = vadd.f32 %v1771, %v1757
  %v1773 = vadd.f32 %v1772, %v1758
  %v1774 = vadd.f32 %v1773, %v1759
  %1775 = vadd.xlane.f32.xlu0 %v1774
  %v1776 = vpop.xlane.xlu0 %1775
  %v1777 = vmul.f32 %v1743, 0.00048828125
  %v1778 = vmul.f32 %v1776, 0.00048828125
  %v1779 = vmul.f32 %v1777, %v1777
  %v1780 = vsub.f32 %v1778, %v1779
  %v1781 = vld [vmem:[%s2] sm:$0xff]
  %v1782 = vadd.f32 %v1780, 1e-05
  %v1783 = vrsqrt.pop %v1782
  %v1784 = vmul.f32 %v1781, %v1783
  %s1785 = scalar_lea.vmem %s2, 8
  %v1786 = vld [vmem:[%s1785] sm:$0xff]
  %v1787 = vmul.f32 %v1777, %v1784
  %v1788 = vsub.f32 %v1786, %v1787
  %1790 = vset.pattern.permute.xlu0 0
  %1791 = vperm.xlu0 %1790, %v1784
  %v1792 = vpop.permute.xlu0 %1791
  %v1794 = vmul.f32 %v495, %v1792
  %v1795 = vmul.f32 %v496, %v1792
  %v1796 = vmul.f32 %v497, %v1792
  %v1797 = vmul.f32 %v498, %v1792
  %v1798 = vmul.f32 %v915, %v1792
  %v1799 = vmul.f32 %v916, %v1792
  %v1800 = vmul.f32 %v917, %v1792
  %v1801 = vmul.f32 %v918, %v1792
  %v1802 = vmul.f32 %v1335, %v1792
  %v1803 = vmul.f32 %v1336, %v1792
  %v1804 = vmul.f32 %v1337, %v1792
  %v1805 = vmul.f32 %v1338, %v1792
  %v1806 = vmul.f32 %v1723, %v1792
  %v1807 = vmul.f32 %v1724, %v1792
  %v1808 = vmul.f32 %v1725, %v1792
  %v1809 = vmul.f32 %v1726, %v1792
  %1811 = vset.pattern.permute.xlu0 0
  %1812 = vperm.xlu0 %1811, %v1788
  %v1813 = vpop.permute.xlu0 %1812
  %v1815 = vadd.f32 %v1794, %v1813
  %v1816 = vadd.f32 %v1795, %v1813
  %v1817 = vadd.f32 %v1796, %v1813
  %v1818 = vadd.f32 %v1797, %v1813
  %v1819 = vadd.f32 %v1798, %v1813
  %v1820 = vadd.f32 %v1799, %v1813
  %v1821 = vadd.f32 %v1800, %v1813
  %v1822 = vadd.f32 %v1801, %v1813
  %v1823 = vadd.f32 %v1802, %v1813
  %v1824 = vadd.f32 %v1803, %v1813
  %v1825 = vadd.f32 %v1804, %v1813
  %v1826 = vadd.f32 %v1805, %v1813
  %v1827 = vadd.f32 %v1806, %v1813
  %v1828 = vadd.f32 %v1807, %v1813
  %v1829 = vadd.f32 %v1808, %v1813
  %v1830 = vadd.f32 %v1809, %v1813
  %v1831 = vmax.f32 %v1815, 0.0
  %v1832 = vmax.f32 %v1816, 0.0
  %v1833 = vmax.f32 %v1817, 0.0
  %v1834 = vmax.f32 %v1818, 0.0
  %v1835 = vmax.f32 %v1819, 0.0
  %v1836 = vmax.f32 %v1820, 0.0
  %v1837 = vmax.f32 %v1821, 0.0
  %v1838 = vmax.f32 %v1822, 0.0
  %v1839 = vmax.f32 %v1823, 0.0
  %v1840 = vmax.f32 %v1824, 0.0
  %v1841 = vmax.f32 %v1825, 0.0
  %v1842 = vmax.f32 %v1826, 0.0
  %v1843 = vmax.f32 %v1827, 0.0
  %v1844 = vmax.f32 %v1828, 0.0
  %v1845 = vmax.f32 %v1829, 0.0
  %v1846 = vmax.f32 %v1830, 0.0
  %1847 = vst [vmem:[%s3] sm:$0xff] %v1831
  %1848 = vst [vmem:[%s3 + $0x8] sm:$0xff] %v1832
  %1849 = vst [vmem:[%s3 + $0x10] sm:$0xff] %v1833
  %1850 = vst [vmem:[%s3 + $0x18] sm:$0xff] %v1834
  %1851 = vst [vmem:[%s3 + $0x20] sm:$0xff] %v1835
  %1852 = vst [vmem:[%s3 + $0x28] sm:$0xff] %v1836
  %1853 = vst [vmem:[%s3 + $0x30] sm:$0xff] %v1837
  %1854 = vst [vmem:[%s3 + $0x38] sm:$0xff] %v1838
  %1855 = vst [vmem:[%s3 + $0x40] sm:$0xff] %v1839
  %1856 = vst [vmem:[%s3 + $0x48] sm:$0xff] %v1840
  %1857 = vst [vmem:[%s3 + $0x50] sm:$0xff] %v1841
  %1858 = vst [vmem:[%s3 + $0x58] sm:$0xff] %v1842
  %1859 = vst [vmem:[%s3 + $0x60] sm:$0xff] %v1843
  %1860 = vst [vmem:[%s3 + $0x68] sm:$0xff] %v1844
  %1861 = vst [vmem:[%s3 + $0x70] sm:$0xff] %v1845
  %1862 = vst [vmem:[%s3 + $0x78] sm:$0xff] %v1846
  // Predicated region
  $region14: #{upsample2d_forward.1} parent=0 // pred_check
    _
  $region15: #{upsample2d_forward.1} parent=0 // pred_check_branch
    %1864 = sbr.rel (0) target = $region17
  $region16: #{upsample2d_forward.1} parent=0 // pred_region
    _
  $region17: #{upsample2d_forward.1} parent=0 // pred_fallthru
    _
  // Predicated region
  $region18: #{upsample2d_forward.1} parent=0 // pred_check
    _
  $region19: #{upsample2d_forward.1} parent=0 // pred_check_branch
    %1866 = sbr.rel (0) target = $region21
  $region20: #{upsample2d_forward.1} parent=0 // pred_region
    _
  $region21: #{upsample2d_forward.1} parent=0 // pred_fallthru
    _

</llo_original>
